<compile_context>
chip_gen: v7x
topology: tpu7x:2x2x1
jax: 0.10.0
libtpu: 0.0.40
codegen_flags: <defaults>
</compile_context>

<pallas_src>
import math

import jax
import jax.numpy as jnp
from jax.experimental import pallas as pl
from jax.experimental.pallas import tpu as pltpu

NEG_INF = -1e9


def _sdpa(q, k, v, key_mask, scale):
    """Batched scaled dot-product attention.

    q: (Bb, Nq, H), k/v: (Bb, Nk, H), key_mask: (Bb, 1, Nk) float {0,1} or None.
    Returns (Bb, Nq, H) float32.  MXU operands in bf16, accumulation + all
    score/mask/softmax math in f32.
    """
    s = jnp.einsum(
        'bqd,bkd->bqk',
        q.astype(jnp.bfloat16), k.astype(jnp.bfloat16),
        preferred_element_type=jnp.float32) * scale            # (Bb, Nq, Nk) f32
    if key_mask is not None:
        s = s + (1.0 - key_mask) * NEG_INF                      # broadcast over Nq
    s = s - jnp.max(s, axis=-1, keepdims=True)
    p = jnp.exp(s)
    p = p * pl.reciprocal(jnp.sum(p, axis=-1, keepdims=True), approx=True)
    return jnp.einsum(
        'bqk,bkd->bqd',
        p.astype(jnp.bfloat16), v.astype(jnp.bfloat16),
        preferred_element_type=jnp.float32)                     # (Bb, Nq, H) f32


def word_layer_kernel(word_ref, wmask_ref, img_ref, fact_ref, fmask_ref,
                      w_mlp_ref, b_mlp_ref, out_ref, q_scratch):
    Bb, _, H = word_ref.shape
    scale = 1.0 / math.sqrt(H)

    word = word_ref[...]        # (Bb, Nw, H)
    img = img_ref[...]          # (Bb, Ni, H)
    fact = fact_ref[...]        # (Bb, Nf, H)
    wmask = wmask_ref[...]      # (Bb, 1, Nw)
    fmask = fmask_ref[...]      # (Bb, 1, Nf)

    # img_att_w = img_attn(img, word, word, word_masks)          -> (Bb, Ni, H)
    img_att = _sdpa(img, word, word, wmask, scale)
    # ques_att_w = word_attn(word, img_att_w, img_att_w)         -> (Bb, Nw, H)
    ques_att = _sdpa(word, img_att, img_att, None, scale)

    # pooling = mean over the sequence axis                      -> (Bb, 1, H)
    pooled_img = jnp.mean(img_att, axis=1, keepdims=True)
    pooled_q = jnp.mean(ques_att, axis=1, keepdims=True)

    # Dropout: eval mode == identity.
    feat_in = (pooled_img + pooled_q)[:, 0, :]                   # (Bb, H)

    # feat_w = tanh(mlp(feat_in))                                -> (Bb, H)
    feat = jnp.tanh(
        jax.lax.dot_general(
            feat_in.astype(jnp.bfloat16), w_mlp_ref[...].astype(jnp.bfloat16),
            dimension_numbers=(((1,), (0,)), ((), ())),
            preferred_element_type=jnp.float32)
        + b_mlp_ref[...])
    feat3 = feat.reshape(Bb, 1, H)                               # (Bb, 1, H)

    # fact_extract queries [pooled_img, pooled_q, feat]: stack via straight
    # VMEM-scratch stores (avoids a sub-(8,128) concatenate / sublane shuffle).
    q_scratch[:, 0:1, :] = pooled_img
    q_scratch[:, 1:2, :] = pooled_q
    q_scratch[:, 2:3, :] = feat3

    bank = _sdpa(q_scratch[...], fact, fact, fmask, scale)       # (Bb, 3, H)

    # Combined output block: row 0 = feat_w, rows 1..3 = bank_w.
    out_ref[:, 0:1, :] = feat3.astype(out_ref.dtype)
    out_ref[:, 1:4, :] = bank.astype(out_ref.dtype)


def word_layer_forward(word_emb, word_masks, img_emb, fact_emb, fact_masks,
                       w_mlp, b_mlp, *, block_b=8):
    B, Nw, H = word_emb.shape
    Ni = img_emb.shape[1]
    Nf = fact_emb.shape[1]

    # Batch-block size.  For very large shapes / v7x (64 MiB VMEM), re-derive
    # block_b so 2x double-buffered inputs fit scoped VMEM; at these sizes the
    # default limit is ample.
    Bb = min(block_b, B)
    num_blocks = (B + Bb - 1) // Bb
    Bp = num_blocks * Bb

    if Bp != B:
        pad = Bp - B
        word_emb = jnp.pad(word_emb, ((0, pad), (0, 0), (0, 0)))
        img_emb = jnp.pad(img_emb, ((0, pad), (0, 0), (0, 0)))
        fact_emb = jnp.pad(fact_emb, ((0, pad), (0, 0), (0, 0)))
        word_masks = jnp.pad(word_masks, ((0, pad), (0, 0)))
        fact_masks = jnp.pad(fact_masks, ((0, pad), (0, 0)))

    # Keep masks 3-D so block last-two-dims match the full array dims.
    wmask3 = word_masks.reshape(Bp, 1, Nw).astype(jnp.float32)
    fmask3 = fact_masks.reshape(Bp, 1, Nf).astype(jnp.float32)

    out = pl.pallas_call(
        word_layer_kernel,
        out_shape=jax.ShapeDtypeStruct((Bp, 4, H), jnp.float32),
        grid=(num_blocks,),
        in_specs=[
            pl.BlockSpec((Bb, Nw, H), lambda b: (b, 0, 0)),   # word
            pl.BlockSpec((Bb, 1, Nw), lambda b: (b, 0, 0)),   # word mask
            pl.BlockSpec((Bb, Ni, H), lambda b: (b, 0, 0)),   # img
            pl.BlockSpec((Bb, Nf, H), lambda b: (b, 0, 0)),   # facts
            pl.BlockSpec((Bb, 1, Nf), lambda b: (b, 0, 0)),   # fact mask
            pl.BlockSpec((H, H), lambda b: (0, 0)),           # mlp W (in, out)
            pl.BlockSpec((1, H), lambda b: (0, 0)),           # mlp b
        ],
        out_specs=pl.BlockSpec((Bb, 4, H), lambda b: (b, 0, 0)),
        scratch_shapes=[pltpu.VMEM((Bb, 3, H), jnp.float32)],
        compiler_params=pltpu.CompilerParams(
            dimension_semantics=("parallel",)),
    )(word_emb, wmask3, img_emb, fact_emb, fmask3, w_mlp, b_mlp)

    out = out[:B]
    feat_w = out[:, 0, :]          # (B, H)
    bank_w = out[:, 1:4, :]        # (B, 3, H)
    return feat_w, bank_w


if __name__ == "__main__":
    B, Nw, Ni, Nf, H = 8, 8, 16, 8, 32

    key = jax.random.PRNGKey(0)
    k_word, k_img, k_fact, k_w = jax.random.split(key, 4)

    word_emb = jax.random.normal(k_word, (B, Nw, H), dtype=jnp.float32)
    img_emb = jax.random.normal(k_img, (B, Ni, H), dtype=jnp.float32)
    fact_emb = jax.random.normal(k_fact, (B, Nf, H), dtype=jnp.float32)

    # 1.0 = valid token, 0.0 = padding (some examples have padded tails).
    word_masks = jnp.ones((B, Nw), dtype=jnp.float32).at[1, 5:].set(0.0)
    word_masks = word_masks.at[5, 3:].set(0.0)
    fact_masks = jnp.ones((B, Nf), dtype=jnp.float32).at[1, 6:].set(0.0)
    fact_masks = fact_masks.at[6, 4:].set(0.0)

    # Deterministic mlp parameters (Linear(H, H) stored as (in, out)).
    w_mlp = 0.05 * jax.random.normal(k_w, (H, H), dtype=jnp.float32)
    b_mlp = jnp.zeros((1, H), dtype=jnp.float32)

    feat_w, bank_w = word_layer_forward(
        word_emb, word_masks, img_emb, fact_emb, fact_masks, w_mlp, b_mlp,
        block_b=4)
    jax.block_until_ready((feat_w, bank_w))

    assert feat_w.shape == (B, H)
    assert bank_w.shape == (B, 3, H)
    assert bool(jnp.all(jnp.isfinite(feat_w))) and bool(jnp.all(jnp.isfinite(bank_w)))
    print("KERNEL_OK")
</pallas_src>

<mosaic_0001>
module attributes {stable_mosaic.version = 11 : i64} {
  func.func @word_layer_kernel(%arg0: i32, %arg1: memref<4x8x32xf32, #tpu.memory_space<vmem>>, %arg2: memref<4x1x8xf32, #tpu.memory_space<vmem>>, %arg3: memref<4x16x32xf32, #tpu.memory_space<vmem>>, %arg4: memref<4x8x32xf32, #tpu.memory_space<vmem>>, %arg5: memref<4x1x8xf32, #tpu.memory_space<vmem>>, %arg6: memref<32x32xf32, #tpu.memory_space<vmem>>, %arg7: memref<1x32xf32, #tpu.memory_space<vmem>>, %arg8: memref<4x4x32xf32, #tpu.memory_space<vmem>>, %arg9: memref<4x3x32xf32, #tpu.memory_space<vmem>>) attributes {dimension_semantics = [#tpu.dimension_semantics<parallel>], iteration_bounds = array<i64: 2>, scalar_prefetch = 0 : i64, scratch_operands = 1 : i64, tpu.core_type = #tpu.core_type<tc>, window_params = [{transform_indices = @transform_0, window_bounds = array<i64: 4, 8, 32>}, {transform_indices = @transform_1, window_bounds = array<i64: 4, 1, 8>}, {transform_indices = @transform_2, window_bounds = array<i64: 4, 16, 32>}, {transform_indices = @transform_3, window_bounds = array<i64: 4, 8, 32>}, {transform_indices = @transform_4, window_bounds = array<i64: 4, 1, 8>}, {pipeline_mode = #tpu.pipeline_mode<synchronous>, transform_indices = @transform_5, window_bounds = array<i64: 32, 32>}, {pipeline_mode = #tpu.pipeline_mode<synchronous>, transform_indices = @transform_6, window_bounds = array<i64: 1, 32>}, {transform_indices = @transform_7, window_bounds = array<i64: 4, 4, 32>}]} {
    %c0 = arith.constant 0 : index
    %c0_0 = arith.constant 0 : index
    %c0_1 = arith.constant 0 : index
    %0 = vector.load %arg1[%c0, %c0_0, %c0_1] : memref<4x8x32xf32, #tpu.memory_space<vmem>>, vector<4x8x32xf32>
    %c0_2 = arith.constant 0 : index
    %c0_3 = arith.constant 0 : index
    %c0_4 = arith.constant 0 : index
    %1 = vector.load %arg3[%c0_2, %c0_3, %c0_4] : memref<4x16x32xf32, #tpu.memory_space<vmem>>, vector<4x16x32xf32>
    %c0_5 = arith.constant 0 : index
    %c0_6 = arith.constant 0 : index
    %c0_7 = arith.constant 0 : index
    %2 = vector.load %arg4[%c0_5, %c0_6, %c0_7] : memref<4x8x32xf32, #tpu.memory_space<vmem>>, vector<4x8x32xf32>
    %c0_8 = arith.constant 0 : index
    %c0_9 = arith.constant 0 : index
    %c0_10 = arith.constant 0 : index
    %3 = vector.load %arg2[%c0_8, %c0_9, %c0_10] : memref<4x1x8xf32, #tpu.memory_space<vmem>>, vector<4x1x8xf32>
    %c0_11 = arith.constant 0 : index
    %c0_12 = arith.constant 0 : index
    %c0_13 = arith.constant 0 : index
    %4 = vector.load %arg5[%c0_11, %c0_12, %c0_13] : memref<4x1x8xf32, #tpu.memory_space<vmem>>, vector<4x1x8xf32>
    %5 = arith.truncf %1 : vector<4x16x32xf32> to vector<4x16x32xbf16>
    %6 = arith.truncf %0 : vector<4x8x32xf32> to vector<4x8x32xbf16>
    "tpu.trace_start"() <{level = 10 : i32, message = "bqd,bkd->bqk"}> : () -> ()
    %cst = arith.constant dense<0.000000e+00> : vector<4x16x8xf32>
    %7 = tpu.matmul %5, %6, %cst {dimension_numbers = #tpu.dot_dimension_numbers<[2], [2], [1], [1], [0, 0, 0, 1, 1, 1], [0], [0]>} : vector<4x16x32xbf16>, vector<4x8x32xbf16>, vector<4x16x8xf32> -> vector<4x16x8xf32>
    "tpu.trace_stop"() : () -> ()
    %cst_14 = arith.constant 0.176776692 : f32
    %8 = vector.broadcast %cst_14 : f32 to vector<4x16x8xf32>
    %9 = arith.mulf %7, %8 : vector<4x16x8xf32>
    %cst_15 = arith.constant 1.000000e+00 : f32
    %10 = vector.broadcast %cst_15 : f32 to vector<4x1x8xf32>
    %11 = arith.subf %10, %3 : vector<4x1x8xf32>
    %cst_16 = arith.constant -1.000000e+09 : f32
    %12 = vector.broadcast %cst_16 : f32 to vector<4x1x8xf32>
    %13 = arith.mulf %11, %12 : vector<4x1x8xf32>
    %14 = vector.broadcast %13 : vector<4x1x8xf32> to vector<4x16x8xf32>
    %15 = arith.addf %9, %14 : vector<4x16x8xf32>
    %cst_17 = arith.constant dense<0xFF800000> : vector<4x16xf32>
    %16 = vector.multi_reduction <maximumf>, %15, %cst_17 [2] : vector<4x16x8xf32> to vector<4x16xf32>
    %17 = vector.shape_cast %16 : vector<4x16xf32> to vector<4x16x1xf32>
    %18 = vector.broadcast %17 : vector<4x16x1xf32> to vector<4x16x8xf32>
    %19 = arith.subf %15, %18 : vector<4x16x8xf32>
    %20 = math.exp %19 : vector<4x16x8xf32>
    %cst_18 = arith.constant dense<0.000000e+00> : vector<4x16xf32>
    %21 = vector.multi_reduction <add>, %20, %cst_18 [2] : vector<4x16x8xf32> to vector<4x16xf32>
    %22 = vector.shape_cast %21 : vector<4x16xf32> to vector<4x16x1xf32>
    %23 = tpu.reciprocal %22 {approx = true} : vector<4x16x1xf32> -> vector<4x16x1xf32>
    %24 = vector.broadcast %23 : vector<4x16x1xf32> to vector<4x16x8xf32>
    %25 = arith.mulf %20, %24 : vector<4x16x8xf32>
    %26 = arith.truncf %25 : vector<4x16x8xf32> to vector<4x16x8xbf16>
    %27 = arith.truncf %0 : vector<4x8x32xf32> to vector<4x8x32xbf16>
    "tpu.trace_start"() <{level = 10 : i32, message = "bqk,bkd->bqd"}> : () -> ()
    %cst_19 = arith.constant dense<0.000000e+00> : vector<4x16x32xf32>
    %28 = tpu.matmul %26, %27, %cst_19 {dimension_numbers = #tpu.dot_dimension_numbers<[2], [1], [1], [2], [0, 0, 0, 1, 1, 2], [0], [0]>} : vector<4x16x8xbf16>, vector<4x8x32xbf16>, vector<4x16x32xf32> -> vector<4x16x32xf32>
    "tpu.trace_stop"() : () -> ()
    %29 = arith.truncf %0 : vector<4x8x32xf32> to vector<4x8x32xbf16>
    %30 = arith.truncf %28 : vector<4x16x32xf32> to vector<4x16x32xbf16>
    "tpu.trace_start"() <{level = 10 : i32, message = "bqd,bkd->bqk"}> : () -> ()
    %cst_20 = arith.constant dense<0.000000e+00> : vector<4x8x16xf32>
    %31 = tpu.matmul %29, %30, %cst_20 {dimension_numbers = #tpu.dot_dimension_numbers<[2], [2], [1], [1], [0, 0, 0, 1, 1, 1], [0], [0]>} : vector<4x8x32xbf16>, vector<4x16x32xbf16>, vector<4x8x16xf32> -> vector<4x8x16xf32>
    "tpu.trace_stop"() : () -> ()
    %cst_21 = arith.constant 0.176776692 : f32
    %32 = vector.broadcast %cst_21 : f32 to vector<4x8x16xf32>
    %33 = arith.mulf %31, %32 : vector<4x8x16xf32>
    %cst_22 = arith.constant dense<0xFF800000> : vector<4x8xf32>
    %34 = vector.multi_reduction <maximumf>, %33, %cst_22 [2] : vector<4x8x16xf32> to vector<4x8xf32>
    %35 = vector.shape_cast %34 : vector<4x8xf32> to vector<4x8x1xf32>
    %36 = vector.broadcast %35 : vector<4x8x1xf32> to vector<4x8x16xf32>
    %37 = arith.subf %33, %36 : vector<4x8x16xf32>
    %38 = math.exp %37 : vector<4x8x16xf32>
    %cst_23 = arith.constant dense<0.000000e+00> : vector<4x8xf32>
    %39 = vector.multi_reduction <add>, %38, %cst_23 [2] : vector<4x8x16xf32> to vector<4x8xf32>
    %40 = vector.shape_cast %39 : vector<4x8xf32> to vector<4x8x1xf32>
    %41 = tpu.reciprocal %40 {approx = true} : vector<4x8x1xf32> -> vector<4x8x1xf32>
    %42 = vector.broadcast %41 : vector<4x8x1xf32> to vector<4x8x16xf32>
    %43 = arith.mulf %38, %42 : vector<4x8x16xf32>
    %44 = arith.truncf %43 : vector<4x8x16xf32> to vector<4x8x16xbf16>
    %45 = arith.truncf %28 : vector<4x16x32xf32> to vector<4x16x32xbf16>
    "tpu.trace_start"() <{level = 10 : i32, message = "bqk,bkd->bqd"}> : () -> ()
    %cst_24 = arith.constant dense<0.000000e+00> : vector<4x8x32xf32>
    %46 = tpu.matmul %44, %45, %cst_24 {dimension_numbers = #tpu.dot_dimension_numbers<[2], [1], [1], [2], [0, 0, 0, 1, 1, 2], [0], [0]>} : vector<4x8x16xbf16>, vector<4x16x32xbf16>, vector<4x8x32xf32> -> vector<4x8x32xf32>
    "tpu.trace_stop"() : () -> ()
    %cst_25 = arith.constant dense<0.000000e+00> : vector<4x32xf32>
    %47 = vector.multi_reduction <add>, %28, %cst_25 [1] : vector<4x16x32xf32> to vector<4x32xf32>
    %48 = vector.shape_cast %47 : vector<4x32xf32> to vector<4x1x32xf32>
    %cst_26 = arith.constant 1.600000e+01 : f32
    %49 = vector.broadcast %cst_26 : f32 to vector<4x1x32xf32>
    %50 = arith.divf %48, %49 : vector<4x1x32xf32>
    %cst_27 = arith.constant dense<0.000000e+00> : vector<4x32xf32>
    %51 = vector.multi_reduction <add>, %46, %cst_27 [1] : vector<4x8x32xf32> to vector<4x32xf32>
    %52 = vector.shape_cast %51 : vector<4x32xf32> to vector<4x1x32xf32>
    %cst_28 = arith.constant 8.000000e+00 : f32
    %53 = vector.broadcast %cst_28 : f32 to vector<4x1x32xf32>
    %54 = arith.divf %52, %53 : vector<4x1x32xf32>
    %55 = arith.addf %50, %54 : vector<4x1x32xf32>
    %56 = vector.shape_cast %55 : vector<4x1x32xf32> to vector<4x32xf32>
    %57 = arith.truncf %56 : vector<4x32xf32> to vector<4x32xbf16>
    %c0_29 = arith.constant 0 : index
    %c0_30 = arith.constant 0 : index
    %58 = vector.load %arg6[%c0_29, %c0_30] : memref<32x32xf32, #tpu.memory_space<vmem>>, vector<32x32xf32>
    %59 = arith.truncf %58 : vector<32x32xf32> to vector<32x32xbf16>
    %cst_31 = arith.constant dense<0.000000e+00> : vector<4x32xf32>
    %60 = tpu.matmul %57, %59, %cst_31 {dimension_numbers = #tpu.dot_dimension_numbers<[1], [0], [0], [1], [0, 0, 1, 1], [], []>} : vector<4x32xbf16>, vector<32x32xbf16>, vector<4x32xf32> -> vector<4x32xf32>
    %c0_32 = arith.constant 0 : index
    %c0_33 = arith.constant 0 : index
    %61 = vector.load %arg7[%c0_32, %c0_33] : memref<1x32xf32, #tpu.memory_space<vmem>>, vector<1x32xf32>
    %62 = vector.broadcast %61 : vector<1x32xf32> to vector<4x32xf32>
    %63 = arith.addf %60, %62 : vector<4x32xf32>
    %64 = math.tanh %63 : vector<4x32xf32>
    %65 = vector.shape_cast %64 : vector<4x32xf32> to vector<4x1x32xf32>
    %c0_34 = arith.constant 0 : index
    %c0_35 = arith.constant 0 : index
    %c0_36 = arith.constant 0 : index
    %66 = vector.load %arg9[%c0_34, %c0_35, %c0_36] : memref<4x3x32xf32, #tpu.memory_space<vmem>>, vector<4x1x32xf32>
    tpu.vector_store %arg9[%c0_34, %c0_35, %c0_36], %50 {strides = array<i32>} : memref<4x3x32xf32, #tpu.memory_space<vmem>>, vector<4x1x32xf32>,
    %c0_37 = arith.constant 0 : index
    %c1 = arith.constant 1 : index
    %c0_38 = arith.constant 0 : index
    %67 = vector.load %arg9[%c0_37, %c1, %c0_38] : memref<4x3x32xf32, #tpu.memory_space<vmem>>, vector<4x1x32xf32>
    tpu.vector_store %arg9[%c0_37, %c1, %c0_38], %54 {strides = array<i32>} : memref<4x3x32xf32, #tpu.memory_space<vmem>>, vector<4x1x32xf32>,
    %c0_39 = arith.constant 0 : index
    %c2 = arith.constant 2 : index
    %c0_40 = arith.constant 0 : index
    %68 = vector.load %arg9[%c0_39, %c2, %c0_40] : memref<4x3x32xf32, #tpu.memory_space<vmem>>, vector<4x1x32xf32>
    tpu.vector_store %arg9[%c0_39, %c2, %c0_40], %65 {strides = array<i32>} : memref<4x3x32xf32, #tpu.memory_space<vmem>>, vector<4x1x32xf32>,
    %c0_41 = arith.constant 0 : index
    %c0_42 = arith.constant 0 : index
    %c0_43 = arith.constant 0 : index
    %69 = vector.load %arg9[%c0_41, %c0_42, %c0_43] : memref<4x3x32xf32, #tpu.memory_space<vmem>>, vector<4x3x32xf32>
    %70 = arith.truncf %69 : vector<4x3x32xf32> to vector<4x3x32xbf16>
    %71 = arith.truncf %2 : vector<4x8x32xf32> to vector<4x8x32xbf16>
    "tpu.trace_start"() <{level = 10 : i32, message = "bqd,bkd->bqk"}> : () -> ()
    %cst_44 = arith.constant dense<0.000000e+00> : vector<4x3x8xf32>
    %72 = tpu.matmul %70, %71, %cst_44 {dimension_numbers = #tpu.dot_dimension_numbers<[2], [2], [1], [1], [0, 0, 0, 1, 1, 1], [0], [0]>} : vector<4x3x32xbf16>, vector<4x8x32xbf16>, vector<4x3x8xf32> -> vector<4x3x8xf32>
    "tpu.trace_stop"() : () -> ()
    %cst_45 = arith.constant 0.176776692 : f32
    %73 = vector.broadcast %cst_45 : f32 to vector<4x3x8xf32>
    %74 = arith.mulf %72, %73 : vector<4x3x8xf32>
    %cst_46 = arith.constant 1.000000e+00 : f32
    %75 = vector.broadcast %cst_46 : f32 to vector<4x1x8xf32>
    %76 = arith.subf %75, %4 : vector<4x1x8xf32>
    %cst_47 = arith.constant -1.000000e+09 : f32
    %77 = vector.broadcast %cst_47 : f32 to vector<4x1x8xf32>
    %78 = arith.mulf %76, %77 : vector<4x1x8xf32>
    %79 = vector.broadcast %78 : vector<4x1x8xf32> to vector<4x3x8xf32>
    %80 = arith.addf %74, %79 : vector<4x3x8xf32>
    %cst_48 = arith.constant dense<0xFF800000> : vector<4x3xf32>
    %81 = vector.multi_reduction <maximumf>, %80, %cst_48 [2] : vector<4x3x8xf32> to vector<4x3xf32>
    %82 = vector.shape_cast %81 : vector<4x3xf32> to vector<4x3x1xf32>
    %83 = vector.broadcast %82 : vector<4x3x1xf32> to vector<4x3x8xf32>
    %84 = arith.subf %80, %83 : vector<4x3x8xf32>
    %85 = math.exp %84 : vector<4x3x8xf32>
    %cst_49 = arith.constant dense<0.000000e+00> : vector<4x3xf32>
    %86 = vector.multi_reduction <add>, %85, %cst_49 [2] : vector<4x3x8xf32> to vector<4x3xf32>
    %87 = vector.shape_cast %86 : vector<4x3xf32> to vector<4x3x1xf32>
    %88 = tpu.reciprocal %87 {approx = true} : vector<4x3x1xf32> -> vector<4x3x1xf32>
    %89 = vector.broadcast %88 : vector<4x3x1xf32> to vector<4x3x8xf32>
    %90 = arith.mulf %85, %89 : vector<4x3x8xf32>
    %91 = arith.truncf %90 : vector<4x3x8xf32> to vector<4x3x8xbf16>
    %92 = arith.truncf %2 : vector<4x8x32xf32> to vector<4x8x32xbf16>
    "tpu.trace_start"() <{level = 10 : i32, message = "bqk,bkd->bqd"}> : () -> ()
    %cst_50 = arith.constant dense<0.000000e+00> : vector<4x3x32xf32>
    %93 = tpu.matmul %91, %92, %cst_50 {dimension_numbers = #tpu.dot_dimension_numbers<[2], [1], [1], [2], [0, 0, 0, 1, 1, 2], [0], [0]>} : vector<4x3x8xbf16>, vector<4x8x32xbf16>, vector<4x3x32xf32> -> vector<4x3x32xf32>
    "tpu.trace_stop"() : () -> ()
    %c0_51 = arith.constant 0 : index
    %c0_52 = arith.constant 0 : index
    %c0_53 = arith.constant 0 : index
    %94 = vector.load %arg8[%c0_51, %c0_52, %c0_53] : memref<4x4x32xf32, #tpu.memory_space<vmem>>, vector<4x1x32xf32>
    tpu.vector_store %arg8[%c0_51, %c0_52, %c0_53], %65 {strides = array<i32>} : memref<4x4x32xf32, #tpu.memory_space<vmem>>, vector<4x1x32xf32>,
    %c0_54 = arith.constant 0 : index
    %c1_55 = arith.constant 1 : index
    %c0_56 = arith.constant 0 : index
    %95 = vector.load %arg8[%c0_54, %c1_55, %c0_56] : memref<4x4x32xf32, #tpu.memory_space<vmem>>, vector<4x3x32xf32>
    tpu.vector_store %arg8[%c0_54, %c1_55, %c0_56], %93 {strides = array<i32>} : memref<4x4x32xf32, #tpu.memory_space<vmem>>, vector<4x3x32xf32>,
    return
  }
  func.func @transform_0(%arg0: i32) -> (i32, i32, i32) {
    %c0_i32 = arith.constant 0 : i32
    %c0_i32_0 = arith.constant 0 : i32
    %c0_i32_1 = arith.constant 0 : i32
    return %arg0, %c0_i32, %c0_i32_0 : i32, i32, i32
  }
  func.func @transform_1(%arg0: i32) -> (i32, i32, i32) {
    %c0_i32 = arith.constant 0 : i32
    %c0_i32_0 = arith.constant 0 : i32
    %c0_i32_1 = arith.constant 0 : i32
    return %arg0, %c0_i32, %c0_i32_0 : i32, i32, i32
  }
  func.func @transform_2(%arg0: i32) -> (i32, i32, i32) {
    %c0_i32 = arith.constant 0 : i32
    %c0_i32_0 = arith.constant 0 : i32
    %c0_i32_1 = arith.constant 0 : i32
    return %arg0, %c0_i32, %c0_i32_0 : i32, i32, i32
  }
  func.func @transform_3(%arg0: i32) -> (i32, i32, i32) {
    %c0_i32 = arith.constant 0 : i32
    %c0_i32_0 = arith.constant 0 : i32
    %c0_i32_1 = arith.constant 0 : i32
    return %arg0, %c0_i32, %c0_i32_0 : i32, i32, i32
  }
  func.func @transform_4(%arg0: i32) -> (i32, i32, i32) {
    %c0_i32 = arith.constant 0 : i32
    %c0_i32_0 = arith.constant 0 : i32
    %c0_i32_1 = arith.constant 0 : i32
    return %arg0, %c0_i32, %c0_i32_0 : i32, i32, i32
  }
  func.func @transform_5(%arg0: i32) -> (i32, i32) {
    %c0_i32 = arith.constant 0 : i32
    %c0_i32_0 = arith.constant 0 : i32
    %c0_i32_1 = arith.constant 0 : i32
    return %c0_i32, %c0_i32_0 : i32, i32
  }
  func.func @transform_6(%arg0: i32) -> (i32, i32) {
    %c0_i32 = arith.constant 0 : i32
    %c0_i32_0 = arith.constant 0 : i32
    %c0_i32_1 = arith.constant 0 : i32
    return %c0_i32, %c0_i32_0 : i32, i32
  }
  func.func @transform_7(%arg0: i32) -> (i32, i32, i32) {
    %c0_i32 = arith.constant 0 : i32
    %c0_i32_0 = arith.constant 0 : i32
    %c0_i32_1 = arith.constant 0 : i32
    return %arg0, %c0_i32, %c0_i32_0 : i32, i32, i32
  }
}

</mosaic_0001>

<llo_original>
// kernel: tpu_custom_call.1
$region0: #{tpu_custom_call.1}
  #allocation0 [shape = 'u32[]', space=smem, size = 0x4, offset = 0x4, fixed_abs, tag = 'smem constant byte address 0x4 - core index']
  #allocation1 [shape = 'u32[144,128]{1,0:T(1,128)}', space=vmem, size = 0x12000, scoped, tag = 'internal scratch']
  #allocation2 [shape = 'f32[4,3,32]{2,1,0:T(4,128)}', space=vmem, size = 0x2000, scoped, tag = 'scratch operand']
  %s0 = inlined_call_operand.hbm [shape: f32[8,8,32], index: 0, kind: input, shape index: {}]
  %s1 = inlined_call_operand.hbm [shape: f32[8,1,8], index: 1, kind: input, shape index: {}]
  %s2 = inlined_call_operand.hbm [shape: f32[8,16,32], index: 2, kind: input, shape index: {}]
  %s3 = inlined_call_operand.hbm [shape: f32[8,8,32], index: 3, kind: input, shape index: {}]
  %s4 = inlined_call_operand.vmem [shape: f32[8,1,8], index: 4, kind: input, shape index: {}]
  %s5 = inlined_call_operand.hbm [shape: f32[32,32], index: 5, kind: input, shape index: {}]
  %s6 = inlined_call_operand.vmem [shape: f32[1,32], index: 6, kind: input, shape index: {}]
  %s7 = inlined_call_operand.hbm [shape: f32[8,4,32], index: 7, kind: output, shape index: {}]
  %s8 = sld [smem:[#allocation0]]
  $region81: #{tpu_custom_call.1} parent=0
    _
  %s10 = ssub.s32 1, %s8
  %s11 = scalar_select 0, %s10, %s8
  $region1: #{tpu_custom_call.1} parent=0
    #allocation3 [shape = 'u8[32768]{0}', space=vmem, size = 0x8000, scoped, tag = 'input window, operand 0']
    #allocation4 [shape = 's32[2]{0}', space=sflag, size = 0x8, scoped, tag = 'scoped memory for tpu_custom_call.1']
    #allocation5 [shape = 's32[2]{0}', space=sflag, size = 0x8, scoped, tag = 'scoped memory for tpu_custom_call.1']
    #allocation6 [shape = 'u8[4096]{0}', space=vmem, size = 0x1000, scoped, tag = 'input window, operand 1']
    #allocation7 [shape = 's32[2]{0}', space=sflag, size = 0x8, scoped, tag = 'scoped memory for tpu_custom_call.1']
    #allocation8 [shape = 'u8[65536]{0}', space=vmem, size = 0x10000, scoped, tag = 'input window, operand 2']
    #allocation9 [shape = 'u8[32768]{0}', space=vmem, size = 0x8000, scoped, tag = 'input window, operand 3']
    #allocation10 [shape = 's32[2]{0}', space=sflag, size = 0x8, scoped, tag = 'scoped memory for tpu_custom_call.1']
    #allocation11 [shape = 'u8[16384]{0}', space=vmem, size = 0x4000, scoped, tag = 'input window, operand 5, single buffered']
    #allocation12 [shape = 'u8[16384]{0}', space=vmem, size = 0x4000, scoped, tag = 'output window, operand 0']
    %12 = vsyncpa [#allocation4], 0
    %s13 = scalar_lea.sflag [#allocation4], 1
    %14 = vsyncpa %s13, 0
    %15 = vsyncpa [#allocation7], 0
    %s16 = scalar_lea.sflag [#allocation7], 1
    %17 = vsyncpa %s16, 0
    %18 = vsyncpa [#allocation10], 0
    %s19 = scalar_lea.sflag [#allocation10], 1
    %20 = vsyncpa %s19, 0
    %21 = vsyncpa [#allocation5], 0
    %s22 = scalar_lea.sflag [#allocation5], 1
    %23 = vsyncpa %s22, 0
    loop: start=0, step=1, limit=4
    $region2: #{tpu_custom_call.1} parent=1 // loop_pre_header
      _
    $region3: #{tpu_custom_call.1} parent=1 // loop_header
      %s25 = sphi 0, %s29
      %p26 = scmp.ge.s32.totalorder %s25, 4
      %s35 = sphi 0, %s37
      %s38 = sphi 0, %s35
      %s39 = sphi 0, %s38
      %s55 = sphi 0, %s39
      %s61 = sphi 0, %s63
      %s64 = sphi 0, %s61
      %s65 = sphi 0, %s64
      %s81 = sphi 0, %s65
      %s87 = sphi 0, %s89
      %s90 = sphi 0, %s87
      %s91 = sphi 0, %s90
      %s107 = sphi 0, %s91
      %s113 = sphi 0, %s115
      %s116 = sphi 0, %s113
      %s117 = sphi 0, %s116
      %s133 = sphi 0, %s117
      %s139 = sphi 0, %s141
      %s142 = sphi 0, %s139
      %s143 = sphi 0, %s142
      %s159 = sphi 0, %s143
      %s163 = sphi 0, %s163
      %s165 = sphi 0, %s163
      %s166 = sphi 0, %s165
      %s180 = sphi 0, %s166
      %s184 = sphi 0, %s184
      %s186 = sphi 0, %s184
      %s187 = sphi 0, %s186
      %s201 = sphi 0, %s187
      %s207 = sphi 0, %s209
      %s210 = sphi 0, %s207
      %s211 = sphi 0, %s210
      %s227 = sphi 0, %s211
    $region4: #{tpu_custom_call.1} parent=1 // loop_header_branch
      %28 = sbr.rel (%p26) target = $region8
    $region5: #{tpu_custom_call.1} parent=1 // loop_body
      %s30 = ssub.s32 %s25, 1
      %s31 = ssub.s32 %s25, 2
      %s32 = sadd.s32 %s25, 1
      %s33 = ssub.s32 %s25, %s32
      %p34 = scmp.eq.s32.totalorder %s33, 0
      %s36 = sadd.s32 %s35, 1
      %s37 = scalar_select %p34, %s35, %s36
      %p40 = pneg %p34
      %p41 = scmp.eq.s32.totalorder %s25, 1
      %p42 = por %p40, %p41
      %p43 = scmp.ne.s32.totalorder %s35, %s38
      %p44 = scmp.eq.s32.totalorder %s25, 0
      %p45 = por %p43, %p44
      %p46 = scmp.ne.s32.totalorder %s35, %s38
      %p47 = scmp.eq.s32.totalorder %s30, 1
      %p48 = por %p46, %p47
      %p49 = scmp.ne.s32.totalorder %s38, %s39
      %p50 = scmp.eq.s32.totalorder %s30, 0
      %p51 = por %p49, %p50
      %p52 = scmp.ne.s32.totalorder %s38, %s39
      %p53 = scmp.eq.s32.totalorder %s31, 1
      %p54 = por %p52, %p53
      %p56 = scmp.ne.s32.totalorder %s39, %s55
      %p57 = scmp.eq.s32.totalorder %s31, 0
      %p58 = por %p56, %p57
      %s59 = ssub.s32 %s25, %s32
      %p60 = scmp.eq.s32.totalorder %s59, 0
      %s62 = sadd.s32 %s61, 1
      %s63 = scalar_select %p60, %s61, %s62
      %p66 = pneg %p60
      %p67 = scmp.eq.s32.totalorder %s25, 1
      %p68 = por %p66, %p67
      %p69 = scmp.ne.s32.totalorder %s61, %s64
      %p70 = scmp.eq.s32.totalorder %s25, 0
      %p71 = por %p69, %p70
      %p72 = scmp.ne.s32.totalorder %s61, %s64
      %p73 = scmp.eq.s32.totalorder %s30, 1
      %p74 = por %p72, %p73
      %p75 = scmp.ne.s32.totalorder %s64, %s65
      %p76 = scmp.eq.s32.totalorder %s30, 0
      %p77 = por %p75, %p76
      %p78 = scmp.ne.s32.totalorder %s64, %s65
      %p79 = scmp.eq.s32.totalorder %s31, 1
      %p80 = por %p78, %p79
      %p82 = scmp.ne.s32.totalorder %s65, %s81
      %p83 = scmp.eq.s32.totalorder %s31, 0
      %p84 = por %p82, %p83
      %s85 = ssub.s32 %s25, %s32
      %p86 = scmp.eq.s32.totalorder %s85, 0
      %s88 = sadd.s32 %s87, 1
      %s89 = scalar_select %p86, %s87, %s88
      %p92 = pneg %p86
      %p93 = scmp.eq.s32.totalorder %s25, 1
      %p94 = por %p92, %p93
      %p95 = scmp.ne.s32.totalorder %s87, %s90
      %p96 = scmp.eq.s32.totalorder %s25, 0
      %p97 = por %p95, %p96
      %p98 = scmp.ne.s32.totalorder %s87, %s90
      %p99 = scmp.eq.s32.totalorder %s30, 1
      %p100 = por %p98, %p99
      %p101 = scmp.ne.s32.totalorder %s90, %s91
      %p102 = scmp.eq.s32.totalorder %s30, 0
      %p103 = por %p101, %p102
      %p104 = scmp.ne.s32.totalorder %s90, %s91
      %p105 = scmp.eq.s32.totalorder %s31, 1
      %p106 = por %p104, %p105
      %p108 = scmp.ne.s32.totalorder %s91, %s107
      %p109 = scmp.eq.s32.totalorder %s31, 0
      %p110 = por %p108, %p109
      %s111 = ssub.s32 %s25, %s32
      %p112 = scmp.eq.s32.totalorder %s111, 0
      %s114 = sadd.s32 %s113, 1
      %s115 = scalar_select %p112, %s113, %s114
      %p118 = pneg %p112
      %p119 = scmp.eq.s32.totalorder %s25, 1
      %p120 = por %p118, %p119
      %p121 = scmp.ne.s32.totalorder %s113, %s116
      %p122 = scmp.eq.s32.totalorder %s25, 0
      %p123 = por %p121, %p122
      %p124 = scmp.ne.s32.totalorder %s113, %s116
      %p125 = scmp.eq.s32.totalorder %s30, 1
      %p126 = por %p124, %p125
      %p127 = scmp.ne.s32.totalorder %s116, %s117
      %p128 = scmp.eq.s32.totalorder %s30, 0
      %p129 = por %p127, %p128
      %p130 = scmp.ne.s32.totalorder %s116, %s117
      %p131 = scmp.eq.s32.totalorder %s31, 1
      %p132 = por %p130, %p131
      %p134 = scmp.ne.s32.totalorder %s117, %s133
      %p135 = scmp.eq.s32.totalorder %s31, 0
      %p136 = por %p134, %p135
      %s137 = ssub.s32 %s25, %s32
      %p138 = scmp.eq.s32.totalorder %s137, 0
      %s140 = sadd.s32 %s139, 1
      %s141 = scalar_select %p138, %s139, %s140
      %p144 = pneg %p138
      %p145 = scmp.eq.s32.totalorder %s25, 1
      %p146 = por %p144, %p145
      %p147 = scmp.ne.s32.totalorder %s139, %s142
      %p148 = scmp.eq.s32.totalorder %s25, 0
      %p149 = por %p147, %p148
      %p150 = scmp.ne.s32.totalorder %s139, %s142
      %p151 = scmp.eq.s32.totalorder %s30, 1
      %p152 = por %p150, %p151
      %p153 = scmp.ne.s32.totalorder %s142, %s143
      %p154 = scmp.eq.s32.totalorder %s30, 0
      %p155 = por %p153, %p154
      %p156 = scmp.ne.s32.totalorder %s142, %s143
      %p157 = scmp.eq.s32.totalorder %s31, 1
      %p158 = por %p156, %p157
      %p160 = scmp.ne.s32.totalorder %s143, %s159
      %p161 = scmp.eq.s32.totalorder %s31, 0
      %p162 = por %p160, %p161
      %s164 = sadd.s32 %s163, 1
      %p167 = scmp.eq.s32.totalorder %s25, 1
      %p168 = scmp.ne.s32.totalorder %s163, %s165
      %p169 = scmp.eq.s32.totalorder %s25, 0
      %p170 = por %p168, %p169
      %p171 = scmp.ne.s32.totalorder %s163, %s165
      %p172 = scmp.eq.s32.totalorder %s30, 1
      %p173 = por %p171, %p172
      %p174 = scmp.ne.s32.totalorder %s165, %s166
      %p175 = scmp.eq.s32.totalorder %s30, 0
      %p176 = por %p174, %p175
      %p177 = scmp.ne.s32.totalorder %s165, %s166
      %p178 = scmp.eq.s32.totalorder %s31, 1
      %p179 = por %p177, %p178
      %p181 = scmp.ne.s32.totalorder %s166, %s180
      %p182 = scmp.eq.s32.totalorder %s31, 0
      %p183 = por %p181, %p182
      %s185 = sadd.s32 %s184, 1
      %p188 = scmp.eq.s32.totalorder %s25, 1
      %p189 = scmp.ne.s32.totalorder %s184, %s186
      %p190 = scmp.eq.s32.totalorder %s25, 0
      %p191 = por %p189, %p190
      %p192 = scmp.ne.s32.totalorder %s184, %s186
      %p193 = scmp.eq.s32.totalorder %s30, 1
      %p194 = por %p192, %p193
      %p195 = scmp.ne.s32.totalorder %s186, %s187
      %p196 = scmp.eq.s32.totalorder %s30, 0
      %p197 = por %p195, %p196
      %p198 = scmp.ne.s32.totalorder %s186, %s187
      %p199 = scmp.eq.s32.totalorder %s31, 1
      %p200 = por %p198, %p199
      %p202 = scmp.ne.s32.totalorder %s187, %s201
      %p203 = scmp.eq.s32.totalorder %s31, 0
      %p204 = por %p202, %p203
      %s205 = ssub.s32 %s25, %s32
      %p206 = scmp.eq.s32.totalorder %s205, 0
      %s208 = sadd.s32 %s207, 1
      %s209 = scalar_select %p206, %s207, %s208
      %p212 = pneg %p206
      %p213 = scmp.eq.s32.totalorder %s25, 1
      %p214 = por %p212, %p213
      %p215 = scmp.ne.s32.totalorder %s207, %s210
      %p216 = scmp.eq.s32.totalorder %s25, 0
      %p217 = por %p215, %p216
      %p218 = scmp.ne.s32.totalorder %s207, %s210
      %p219 = scmp.eq.s32.totalorder %s30, 1
      %p220 = por %p218, %p219
      %p221 = scmp.ne.s32.totalorder %s210, %s211
      %p222 = scmp.eq.s32.totalorder %s30, 0
      %p223 = por %p221, %p222
      %p224 = scmp.ne.s32.totalorder %s210, %s211
      %p225 = scmp.eq.s32.totalorder %s31, 1
      %p226 = por %p224, %p225
      %p228 = scmp.ne.s32.totalorder %s211, %s227
      %p229 = scmp.eq.s32.totalorder %s31, 0
      %p230 = por %p228, %p229
      %p231 = scmp.le.s32.totalorder 1, %s25
      %p232 = scmp.lt.s32.totalorder %s25, 3
      %p233 = pnand %p231, %p232
      %p234 = pneg %p233
      // Predicated region
      $region9: #{tpu_custom_call.1} parent=5 // pred_check
        _
      $region10: #{tpu_custom_call.1} parent=5 // pred_check_branch
        %236 = sbr.rel (%p233) target = $region12
      $region11: #{tpu_custom_call.1} parent=5 // pred_region
        %s237 = ssub.s32 %s25, 1
        // Predicated region
        $region13: #{tpu_custom_call.1} parent=11 // pred_check
          %p238 = pneg %p176
        $region14: #{tpu_custom_call.1} parent=11 // pred_check_branch
          %240 = sbr.rel (%p238) target = $region16
        $region15: #{tpu_custom_call.1} parent=11 // pred_region
          %s242 = ssub.s32 512, 512
          %243 = vsyncadd [#allocation10], %s242
          %s244 = sshll.u32 [#allocation11], 4
          %s245 = int_to_ptr.vmem [resolvable:$true] %s244
          %250 = dma.hbm_to_vmem [thread:$0]  %s5, 512, %s245, [#allocation10], 128, 128, 8
        $region16: #{tpu_custom_call.1} parent=11 // pred_fallthru
          _
        // Predicated region
        $region17: #{tpu_custom_call.1} parent=11 // pred_check
          %p251 = pneg %p197
        $region18: #{tpu_custom_call.1} parent=11 // pred_check_branch
          %253 = sbr.rel (%p251) target = $region20
        $region19: #{tpu_custom_call.1} parent=11 // pred_region
          _
        $region20: #{tpu_custom_call.1} parent=11 // pred_fallthru
          _
      $region12: #{tpu_custom_call.1} parent=5 // pred_fallthru
        _
      %p254 = scmp.lt.s32.totalorder %s25, 2
      // Predicated region
      $region21: #{tpu_custom_call.1} parent=5 // pred_check
        %p255 = pneg %p254
      $region22: #{tpu_custom_call.1} parent=5 // pred_check_branch
        %257 = sbr.rel (%p255) target = $region24
      $region23: #{tpu_custom_call.1} parent=5 // pred_region
        // Predicated region
        $region25: #{tpu_custom_call.1} parent=23 // pred_check
          %p258 = pneg %p45
        $region26: #{tpu_custom_call.1} parent=23 // pred_check_branch
          %260 = sbr.rel (%p258) target = $region28
        $region27: #{tpu_custom_call.1} parent=23 // pred_region
          %s261 = sand.u32 %s35, 1
          %s262 = scalar_lea.sflag [#allocation4], %s261
          %s263 = sand.u32 %s35, 1
          %s264 = smul.addr %s263, 32
          %s265 = scalar_lea.vmem [#allocation3], %s264
          %s266 = smul.u32 4, %s25
          %s268 = ssub.s32 512, 512
          %269 = vsyncadd %s262, %s268
          %s270 = smul.addr %s266, 128
          %s271 = scalar_lea.hbm %s0, %s270
          %s272 = sshll.u32 %s265, 4
          %s273 = int_to_ptr.vmem [resolvable:$true] %s272
          %278 = dma.hbm_to_vmem [thread:$0]  %s271, 512, %s273, %s262, 128, 128, 8
        $region28: #{tpu_custom_call.1} parent=23 // pred_fallthru
          _
        // Predicated region
        $region29: #{tpu_custom_call.1} parent=23 // pred_check
          %p279 = pneg %p71
        $region30: #{tpu_custom_call.1} parent=23 // pred_check_branch
          %281 = sbr.rel (%p279) target = $region32
        $region31: #{tpu_custom_call.1} parent=23 // pred_region
          %s282 = sand.u32 %s25, 1
          %s283 = scalar_lea.sflag [#allocation7], %s282
          %s284 = sand.u32 %s61, 1
          %s285 = smul.addr %s284, 4
          %s286 = scalar_lea.vmem [#allocation6], %s285
          %s287 = smul.u32 4, %s25
          %s289 = ssub.s32 64, 64
          %290 = vsyncadd %s283, %s289
          %s291 = smul.addr %s287, 16
          %s292 = scalar_lea.hbm %s1, %s291
          %s293 = sshll.u32 %s286, 4
          %s294 = int_to_ptr.vmem [resolvable:$true] %s293
          %299 = dma.hbm_to_vmem [thread:$0]  %s292, 64, %s294, %s283, 16, 16, 1
        $region32: #{tpu_custom_call.1} parent=23 // pred_fallthru
          _
        // Predicated region
        $region33: #{tpu_custom_call.1} parent=23 // pred_check
          %p300 = pneg %p97
        $region34: #{tpu_custom_call.1} parent=23 // pred_check_branch
          %302 = sbr.rel (%p300) target = $region36
        $region35: #{tpu_custom_call.1} parent=23 // pred_region
          %s303 = sand.u32 %s25, 1
          %s304 = scalar_lea.sflag [#allocation7], %s303
          %s305 = sand.u32 %s87, 1
          %s306 = smul.addr %s305, 64
          %s307 = scalar_lea.vmem [#allocation8], %s306
          %s308 = smul.u32 4, %s25
          %s310 = ssub.s32 1024, 1024
          %311 = vsyncadd %s304, %s310
          %s312 = smul.addr %s308, 2
          %s313 = smul.addr %s312, 128
          %s314 = scalar_lea.hbm %s2, %s313
          %s315 = sshll.u32 %s307, 4
          %s316 = int_to_ptr.vmem [resolvable:$true] %s315
          %321 = dma.hbm_to_vmem [thread:$0]  %s314, 1024, %s316, %s304, 128, 128, 8
        $region36: #{tpu_custom_call.1} parent=23 // pred_fallthru
          _
        // Predicated region
        $region37: #{tpu_custom_call.1} parent=23 // pred_check
          %p322 = pneg %p123
        $region38: #{tpu_custom_call.1} parent=23 // pred_check_branch
          %324 = sbr.rel (%p322) target = $region40
        $region39: #{tpu_custom_call.1} parent=23 // pred_region
          %s325 = sand.u32 %s25, 1
          %s326 = scalar_lea.sflag [#allocation10], %s325
          %s327 = sand.u32 %s113, 1
          %s328 = smul.addr %s327, 32
          %s329 = scalar_lea.vmem [#allocation9], %s328
          %s330 = smul.u32 4, %s25
          %s332 = ssub.s32 512, 512
          %333 = vsyncadd %s326, %s332
          %s334 = smul.addr %s330, 128
          %s335 = scalar_lea.hbm %s3, %s334
          %s336 = sshll.u32 %s329, 4
          %s337 = int_to_ptr.vmem [resolvable:$true] %s336
          %342 = dma.hbm_to_vmem [thread:$0]  %s335, 512, %s337, %s326, 128, 128, 8
        $region40: #{tpu_custom_call.1} parent=23 // pred_fallthru
          _
        // Predicated region
        $region41: #{tpu_custom_call.1} parent=23 // pred_check
          %p343 = pneg %p149
        $region42: #{tpu_custom_call.1} parent=23 // pred_check_branch
          %345 = sbr.rel (%p343) target = $region44
        $region43: #{tpu_custom_call.1} parent=23 // pred_region
          %s346 = smul.u32 4, %s25
          %p347 = scmp.lt.s32.totalorder %s346, 7
          %s348 = scalar_select %p347, %s346, 7
          %s349 = scalar_lea.vmem %s4, %s348
          %s350 = smul.u32 4, %s25
        $region44: #{tpu_custom_call.1} parent=23 // pred_fallthru
          _
      $region24: #{tpu_custom_call.1} parent=5 // pred_fallthru
        _
      %p351 = scmp.le.s32.totalorder 1, %s25
      %p352 = scmp.lt.s32.totalorder %s25, 3
      %p353 = pnand %p351, %p352
      %p354 = pneg %p353
      // Predicated region
      $region45: #{tpu_custom_call.1} parent=5 // pred_check
        _
      $region46: #{tpu_custom_call.1} parent=5 // pred_check_branch
        %356 = sbr.rel (%p353) target = $region48
      $region47: #{tpu_custom_call.1} parent=5 // pred_region
        %s357 = ssub.s32 %s25, 1
        %s358 = sand.u32 %s38, 1
        %s359 = scalar_lea.sflag [#allocation4], %s358
        %s360 = sand.u32 %s38, 1
        %s361 = smul.addr %s360, 32
        %s362 = scalar_lea.vmem [#allocation3], %s361
        // Predicated region
        $region49: #{tpu_custom_call.1} parent=47 // pred_check
          %p363 = pneg %p51
        $region50: #{tpu_custom_call.1} parent=47 // pred_check_branch
          %365 = sbr.rel (%p363) target = $region52
        $region51: #{tpu_custom_call.1} parent=47 // pred_region
          %366 = dma.done %s359, 512
        $region52: #{tpu_custom_call.1} parent=47 // pred_fallthru
          _
        %s367 = sand.u32 %s30, 1
        %s368 = scalar_lea.sflag [#allocation7], %s367
        %s369 = sand.u32 %s64, 1
        %s370 = smul.addr %s369, 4
        %s371 = scalar_lea.vmem [#allocation6], %s370
        // Predicated region
        $region53: #{tpu_custom_call.1} parent=47 // pred_check
          %p372 = pneg %p77
        $region54: #{tpu_custom_call.1} parent=47 // pred_check_branch
          %374 = sbr.rel (%p372) target = $region56
        $region55: #{tpu_custom_call.1} parent=47 // pred_region
          %375 = dma.done %s368, 64
        $region56: #{tpu_custom_call.1} parent=47 // pred_fallthru
          _
        %s376 = sand.u32 %s30, 1
        %s377 = scalar_lea.sflag [#allocation7], %s376
        %s378 = sand.u32 %s90, 1
        %s379 = smul.addr %s378, 64
        %s380 = scalar_lea.vmem [#allocation8], %s379
        // Predicated region
        $region57: #{tpu_custom_call.1} parent=47 // pred_check
          %p381 = pneg %p103
        $region58: #{tpu_custom_call.1} parent=47 // pred_check_branch
          %383 = sbr.rel (%p381) target = $region60
        $region59: #{tpu_custom_call.1} parent=47 // pred_region
          %384 = dma.done %s377, 1024
        $region60: #{tpu_custom_call.1} parent=47 // pred_fallthru
          _
        %s385 = sand.u32 %s30, 1
        %s386 = scalar_lea.sflag [#allocation10], %s385
        %s387 = sand.u32 %s116, 1
        %s388 = smul.addr %s387, 32
        %s389 = scalar_lea.vmem [#allocation9], %s388
        // Predicated region
        $region61: #{tpu_custom_call.1} parent=47 // pred_check
          %p390 = pneg %p129
        $region62: #{tpu_custom_call.1} parent=47 // pred_check_branch
          %392 = sbr.rel (%p390) target = $region64
        $region63: #{tpu_custom_call.1} parent=47 // pred_region
          %393 = dma.done %s386, 512
        $region64: #{tpu_custom_call.1} parent=47 // pred_fallthru
          _
        // Predicated region
        $region65: #{tpu_custom_call.1} parent=47 // pred_check
          %p394 = pneg %p176
        $region66: #{tpu_custom_call.1} parent=47 // pred_check_branch
          %396 = sbr.rel (%p394) target = $region68
        $region67: #{tpu_custom_call.1} parent=47 // pred_region
          %397 = dma.done [#allocation10], 512
        $region68: #{tpu_custom_call.1} parent=47 // pred_fallthru
          _
        %s398 = sand.u32 %s38, 1
        %s399 = scalar_lea.sflag [#allocation4], %s398
        %s400 = sand.u32 %s38, 1
        %s401 = smul.addr %s400, 32
        %s402 = scalar_lea.vmem [#allocation3], %s401
        %p403 = pneg %p51
        %p404 = pneg %p48
        %s405 = sand.u32 %s30, 1
        %s406 = scalar_lea.sflag [#allocation7], %s405
        %s407 = sand.u32 %s64, 1
        %s408 = smul.addr %s407, 4
        %s409 = scalar_lea.vmem [#allocation6], %s408
        %p410 = pneg %p77
        %p411 = pneg %p74
        %s412 = sand.u32 %s30, 1
        %s413 = scalar_lea.sflag [#allocation7], %s412
        %s414 = sand.u32 %s90, 1
        %s415 = smul.addr %s414, 64
        %s416 = scalar_lea.vmem [#allocation8], %s415
        %p417 = pneg %p103
        %p418 = pneg %p100
        %s419 = sand.u32 %s30, 1
        %s420 = scalar_lea.sflag [#allocation10], %s419
        %s421 = sand.u32 %s116, 1
        %s422 = smul.addr %s421, 32
        %s423 = scalar_lea.vmem [#allocation9], %s422
        %p424 = pneg %p129
        %p425 = pneg %p126
        %s426 = smul.u32 4, %s30
        %p427 = scmp.lt.s32.totalorder %s426, 7
        %s428 = scalar_select %p427, %s426, 7
        %s429 = scalar_lea.vmem %s4, %s428
        %p430 = pneg %p155
        %p431 = pneg %p152
        %p432 = pneg %p176
        %p433 = pneg %p173
        %p434 = pneg %p197
        %p435 = pneg %p194
        %p436 = pneg %p223
        %p437 = pneg %p220
        %s438 = sand.u32 %s210, 1
        %s439 = scalar_lea.sflag [#allocation5], %s438
        %s440 = sand.u32 %s210, 1
        %s441 = smul.addr %s440, 16
        %s442 = scalar_lea.vmem [#allocation12], %s441
        %s443 = smul.u32 4, %s30
        %s444 = smul.u32 4, %s30
        %s445 = smul.u32 4, %s30
        %s446 = smul.u32 4, %s30
        %s447 = smul.u32 4, %s30
        %p448 = scmp.lt.s32.totalorder %s447, 7
        %s449 = scalar_select %p448, %s447, 7
        %s450 = scalar_lea.vmem %s4, %s449
        %s451 = smul.u32 4, %s30
        %s452 = smul.u32 4, %s30
        %v454 = vld [vmem:[%s362] sm:$0xff]
        %v455 = vld [vmem:[%s362 + $0x8] sm:$0xff]
        %v456 = vld [vmem:[%s362 + $0x10] sm:$0xff]
        %v457 = vld [vmem:[%s362 + $0x18] sm:$0xff]
        %v458 = vld [vmem:[%s380] sm:$0xff]
        %v459 = vld [vmem:[%s380 + $0x8] sm:$0xff]
        %v460 = vld [vmem:[%s380 + $0x10] sm:$0xff]
        %v461 = vld [vmem:[%s380 + $0x18] sm:$0xff]
        %v462 = vld [vmem:[%s380 + $0x20] sm:$0xff]
        %v463 = vld [vmem:[%s380 + $0x28] sm:$0xff]
        %v464 = vld [vmem:[%s380 + $0x30] sm:$0xff]
        %v465 = vld [vmem:[%s380 + $0x38] sm:$0xff]
        %v466 = vld [vmem:[%s389] sm:$0xff]
        %v467 = vld [vmem:[%s389 + $0x8] sm:$0xff]
        %v468 = vld [vmem:[%s389 + $0x10] sm:$0xff]
        %v469 = vld [vmem:[%s389 + $0x18] sm:$0xff]
        %v470 = vld [vmem:[%s371] sm:$0x1]
        %v471 = vld [vmem:[%s371 + $0x1] sm:$0x1]
        %v472 = vld [vmem:[%s371 + $0x2] sm:$0x1]
        %v473 = vld [vmem:[%s371 + $0x3] sm:$0x1]
        %v474 = vld [vmem:[%s450] sm:$0x1]
        %v475 = vld [vmem:[%s450 + $0x1] sm:$0x1]
        %v476 = vld [vmem:[%s450 + $0x2] sm:$0x1]
        %v477 = vld [vmem:[%s450 + $0x3] sm:$0x1]
        %v478 = vpack.c.bf16 %v459, %v458
        %v479 = vpack.c.bf16 %v461, %v460
        %v480 = vpack.c.bf16 %v463, %v462
        %v481 = vpack.c.bf16 %v465, %v464
        %v482 = vpack.c.bf16 %v454, %v454
        %v483 = vpack.c.bf16 %v455, %v455
        %v484 = vpack.c.bf16 %v456, %v456
        %v485 = vpack.c.bf16 %v457, %v457
        %vm486 = vcmask 261120
        %v488 = vsel %vm486, %v478, 0
        %v491 = vsel %vm486, %v482, 0
        %493 = vmatprep.subr.bf16.mxu0 0
        %494 = vmatpush1.bf16.xpose.msra.mxu0 %v491
        %495 = vmatprep.subr.bf16.mxu0 0
        %496 = vmatpush1.bf16.xpose.msra.mxu0 0
        %497 = vmatprep.subr.bf16.mxu0 0
        %498 = vmatpush1.bf16.xpose.msra.mxu0 0
        %499 = vmatprep.subr.bf16.mxu0 0
        %500 = vmatpush1.bf16.xpose.msra.mxu0 0
        %501 = vmatprep.subr.bf16.mxu0 0
        %502 = vmatpush1.bf16.xpose.msra.mxu0 0
        %503 = vmatprep.subr.bf16.mxu0 0
        %504 = vmatpush1.bf16.xpose.msra.mxu0 0
        %505 = vmatprep.subr.bf16.mxu0 0
        %506 = vmatpush1.bf16.xpose.msra.mxu0 0
        %507 = vmatprep.subr.bf16.mxu0 0
        %508 = vmatpush1.bf16.xpose.msra.mxu0 0
        %509 = vmatprep.subr.bf16.mxu0 0
        %510 = vmatpush1.bf16.xpose.msra.mxu0 0
        %511 = vmatprep.subr.bf16.mxu0 0
        %512 = vmatpush1.bf16.xpose.msra.mxu0 0
        %513 = vmatprep.subr.bf16.mxu0 0
        %514 = vmatpush1.bf16.xpose.msra.mxu0 0
        %515 = vmatprep.subr.bf16.mxu0 0
        %516 = vmatpush1.bf16.xpose.msra.mxu0 0
        %517 = vmatprep.subr.bf16.mxu0 0
        %518 = vmatpush1.bf16.xpose.msra.mxu0 0
        %519 = vmatprep.subr.bf16.mxu0 0
        %520 = vmatpush1.bf16.xpose.msra.mxu0 0
        %521 = vmatprep.subr.bf16.mxu0 0
        %522 = vmatpush1.bf16.xpose.msra.mxu0 0
        %523 = vmatprep.subr.bf16.mxu0 0
        %524 = vmatpush1.bf16.xpose.msra.mxu0 0
        %525 = vmatprep.mubr.bf16.mxu0 0
        %526 = vmatmul.mubr.bf16.gmra.mrb[0].mxu0 %v488
        %v527 = vpop.f32.mrb[0].mxu0
        %v528 = vadd.f32 0.0, %v527
        %v529 = vpop.f32.mrb[0].mxu0
        %v530 = vpop.f32.mrb[0].mxu0
        %v531 = vadd.f32 0.0, %v530
        %v532 = vpop.f32.mrb[0].mxu0
        %533 = vdwg.mxu0
        %v535 = vsel %vm486, %v479, 0
        %v538 = vsel %vm486, %v483, 0
        %540 = vmatprep.subr.bf16.mxu0 0
        %541 = vmatpush1.bf16.xpose.msra.mxu0 %v538
        %542 = vmatprep.subr.bf16.mxu0 0
        %543 = vmatpush1.bf16.xpose.msra.mxu0 0
        %544 = vmatprep.subr.bf16.mxu0 0
        %545 = vmatpush1.bf16.xpose.msra.mxu0 0
        %546 = vmatprep.subr.bf16.mxu0 0
        %547 = vmatpush1.bf16.xpose.msra.mxu0 0
        %548 = vmatprep.subr.bf16.mxu0 0
        %549 = vmatpush1.bf16.xpose.msra.mxu0 0
        %550 = vmatprep.subr.bf16.mxu0 0
        %551 = vmatpush1.bf16.xpose.msra.mxu0 0
        %552 = vmatprep.subr.bf16.mxu0 0
        %553 = vmatpush1.bf16.xpose.msra.mxu0 0
        %554 = vmatprep.subr.bf16.mxu0 0
        %555 = vmatpush1.bf16.xpose.msra.mxu0 0
        %556 = vmatprep.subr.bf16.mxu0 0
        %557 = vmatpush1.bf16.xpose.msra.mxu0 0
        %558 = vmatprep.subr.bf16.mxu0 0
        %559 = vmatpush1.bf16.xpose.msra.mxu0 0
        %560 = vmatprep.subr.bf16.mxu0 0
        %561 = vmatpush1.bf16.xpose.msra.mxu0 0
        %562 = vmatprep.subr.bf16.mxu0 0
        %563 = vmatpush1.bf16.xpose.msra.mxu0 0
        %564 = vmatprep.subr.bf16.mxu0 0
        %565 = vmatpush1.bf16.xpose.msra.mxu0 0
        %566 = vmatprep.subr.bf16.mxu0 0
        %567 = vmatpush1.bf16.xpose.msra.mxu0 0
        %568 = vmatprep.subr.bf16.mxu0 0
        %569 = vmatpush1.bf16.xpose.msra.mxu0 0
        %570 = vmatprep.subr.bf16.mxu0 0
        %571 = vmatpush1.bf16.xpose.msra.mxu0 0
        %572 = vmatprep.mubr.bf16.mxu0 0
        %573 = vmatmul.mubr.bf16.gmra.mrb[0].mxu0 %v535
        %v574 = vpop.f32.mrb[0].mxu0
        %v575 = vadd.f32 0.0, %v574
        %v576 = vpop.f32.mrb[0].mxu0
        %v577 = vpop.f32.mrb[0].mxu0
        %v578 = vadd.f32 0.0, %v577
        %v579 = vpop.f32.mrb[0].mxu0
        %580 = vdwg.mxu0
        %v582 = vsel %vm486, %v480, 0
        %v585 = vsel %vm486, %v484, 0
        %587 = vmatprep.subr.bf16.mxu0 0
        %588 = vmatpush1.bf16.xpose.msra.mxu0 %v585
        %589 = vmatprep.subr.bf16.mxu0 0
        %590 = vmatpush1.bf16.xpose.msra.mxu0 0
        %591 = vmatprep.subr.bf16.mxu0 0
        %592 = vmatpush1.bf16.xpose.msra.mxu0 0
        %593 = vmatprep.subr.bf16.mxu0 0
        %594 = vmatpush1.bf16.xpose.msra.mxu0 0
        %595 = vmatprep.subr.bf16.mxu0 0
        %596 = vmatpush1.bf16.xpose.msra.mxu0 0
        %597 = vmatprep.subr.bf16.mxu0 0
        %598 = vmatpush1.bf16.xpose.msra.mxu0 0
        %599 = vmatprep.subr.bf16.mxu0 0
        %600 = vmatpush1.bf16.xpose.msra.mxu0 0
        %601 = vmatprep.subr.bf16.mxu0 0
        %602 = vmatpush1.bf16.xpose.msra.mxu0 0
        %603 = vmatprep.subr.bf16.mxu0 0
        %604 = vmatpush1.bf16.xpose.msra.mxu0 0
        %605 = vmatprep.subr.bf16.mxu0 0
        %606 = vmatpush1.bf16.xpose.msra.mxu0 0
        %607 = vmatprep.subr.bf16.mxu0 0
        %608 = vmatpush1.bf16.xpose.msra.mxu0 0
        %609 = vmatprep.subr.bf16.mxu0 0
        %610 = vmatpush1.bf16.xpose.msra.mxu0 0
        %611 = vmatprep.subr.bf16.mxu0 0
        %612 = vmatpush1.bf16.xpose.msra.mxu0 0
        %613 = vmatprep.subr.bf16.mxu0 0
        %614 = vmatpush1.bf16.xpose.msra.mxu0 0
        %615 = vmatprep.subr.bf16.mxu0 0
        %616 = vmatpush1.bf16.xpose.msra.mxu0 0
        %617 = vmatprep.subr.bf16.mxu0 0
        %618 = vmatpush1.bf16.xpose.msra.mxu0 0
        %619 = vmatprep.mubr.bf16.mxu0 0
        %620 = vmatmul.mubr.bf16.gmra.mrb[0].mxu0 %v582
        %v621 = vpop.f32.mrb[0].mxu0
        %v622 = vadd.f32 0.0, %v621
        %v623 = vpop.f32.mrb[0].mxu0
        %v624 = vpop.f32.mrb[0].mxu0
        %v625 = vadd.f32 0.0, %v624
        %v626 = vpop.f32.mrb[0].mxu0
        %627 = vdwg.mxu0
        %v629 = vsel %vm486, %v481, 0
        %v632 = vsel %vm486, %v485, 0
        %634 = vmatprep.subr.bf16.mxu0 0
        %635 = vmatpush1.bf16.xpose.msra.mxu0 %v632
        %636 = vmatprep.subr.bf16.mxu0 0
        %637 = vmatpush1.bf16.xpose.msra.mxu0 0
        %638 = vmatprep.subr.bf16.mxu0 0
        %639 = vmatpush1.bf16.xpose.msra.mxu0 0
        %640 = vmatprep.subr.bf16.mxu0 0
        %641 = vmatpush1.bf16.xpose.msra.mxu0 0
        %642 = vmatprep.subr.bf16.mxu0 0
        %643 = vmatpush1.bf16.xpose.msra.mxu0 0
        %644 = vmatprep.subr.bf16.mxu0 0
        %645 = vmatpush1.bf16.xpose.msra.mxu0 0
        %646 = vmatprep.subr.bf16.mxu0 0
        %647 = vmatpush1.bf16.xpose.msra.mxu0 0
        %648 = vmatprep.subr.bf16.mxu0 0
        %649 = vmatpush1.bf16.xpose.msra.mxu0 0
        %650 = vmatprep.subr.bf16.mxu0 0
        %651 = vmatpush1.bf16.xpose.msra.mxu0 0
        %652 = vmatprep.subr.bf16.mxu0 0
        %653 = vmatpush1.bf16.xpose.msra.mxu0 0
        %654 = vmatprep.subr.bf16.mxu0 0
        %655 = vmatpush1.bf16.xpose.msra.mxu0 0
        %656 = vmatprep.subr.bf16.mxu0 0
        %657 = vmatpush1.bf16.xpose.msra.mxu0 0
        %658 = vmatprep.subr.bf16.mxu0 0
        %659 = vmatpush1.bf16.xpose.msra.mxu0 0
        %660 = vmatprep.subr.bf16.mxu0 0
        %661 = vmatpush1.bf16.xpose.msra.mxu0 0
        %662 = vmatprep.subr.bf16.mxu0 0
        %663 = vmatpush1.bf16.xpose.msra.mxu0 0
        %664 = vmatprep.subr.bf16.mxu0 0
        %665 = vmatpush1.bf16.xpose.msra.mxu0 0
        %666 = vmatprep.mubr.bf16.mxu0 0
        %667 = vmatmul.mubr.bf16.gmra.mrb[0].mxu0 %v629
        %v668 = vpop.f32.mrb[0].mxu0
        %v669 = vadd.f32 0.0, %v668
        %v670 = vpop.f32.mrb[0].mxu0
        %v671 = vpop.f32.mrb[0].mxu0
        %v672 = vadd.f32 0.0, %v671
        %v673 = vpop.f32.mrb[0].mxu0
        %674 = vdwg.mxu0
        %v675 = vmul.f32 %v528, 0.17677669
        %v676 = vmul.f32 %v531, 0.17677669
        %v677 = vmul.f32 %v575, 0.17677669
        %v678 = vmul.f32 %v578, 0.17677669
        %v679 = vmul.f32 %v622, 0.17677669
        %v680 = vmul.f32 %v625, 0.17677669
        %v681 = vmul.f32 %v669, 0.17677669
        %v682 = vmul.f32 %v672, 0.17677669
        %v683 = vsub.f32 1.0, %v470
        %v684 = vsub.f32 1.0, %v471
        %v685 = vsub.f32 1.0, %v472
        %v686 = vsub.f32 1.0, %v473
        %v687 = vmul.f32 %v683, -1e+09
        %v688 = vmul.f32 %v684, -1e+09
        %v689 = vmul.f32 %v685, -1e+09
        %v690 = vmul.f32 %v686, -1e+09
        %v695 = vlaneseq
        %v696 = vshrl.u32 %v695, 7
        %v697 = vsub.s32 0, %v696
        %v698 = vrot.slane %v687, %v697
        %v699 = vlaneseq
        %v700 = vshrl.u32 %v699, 7
        %v701 = vsub.s32 0, %v700
        %v702 = vrot.slane %v688, %v701
        %v703 = vlaneseq
        %v704 = vshrl.u32 %v703, 7
        %v705 = vsub.s32 0, %v704
        %v706 = vrot.slane %v689, %v705
        %v707 = vlaneseq
        %v708 = vshrl.u32 %v707, 7
        %v709 = vsub.s32 0, %v708
        %v710 = vrot.slane %v690, %v709
        %v715 = vadd.f32 %v675, %v698
        %v716 = vadd.f32 %v676, %v698
        %v717 = vadd.f32 %v677, %v702
        %v718 = vadd.f32 %v678, %v702
        %v719 = vadd.f32 %v679, %v706
        %v720 = vadd.f32 %v680, %v706
        %v721 = vadd.f32 %v681, %v710
        %v722 = vadd.f32 %v682, %v710
        %vm723 = vcmask 64512
        %v724 = vsel %vm723, %v715, -inf
        %725 = vmax.xlane.f32.xlu0 %v724
        %v726 = vpop.xlane.xlu0 %725
        %v727 = vsel %vm723, %v716, -inf
        %728 = vmax.xlane.f32.xlu0 %v727
        %v729 = vpop.xlane.xlu0 %728
        %v730 = vsel %vm723, %v717, -inf
        %731 = vmax.xlane.f32.xlu0 %v730
        %v732 = vpop.xlane.xlu0 %731
        %v733 = vsel %vm723, %v718, -inf
        %734 = vmax.xlane.f32.xlu0 %v733
        %v735 = vpop.xlane.xlu0 %734
        %v736 = vsel %vm723, %v719, -inf
        %737 = vmax.xlane.f32.xlu0 %v736
        %v738 = vpop.xlane.xlu0 %737
        %v739 = vsel %vm723, %v720, -inf
        %740 = vmax.xlane.f32.xlu0 %v739
        %v741 = vpop.xlane.xlu0 %740
        %v742 = vsel %vm723, %v721, -inf
        %743 = vmax.xlane.f32.xlu0 %v742
        %v744 = vpop.xlane.xlu0 %743
        %v745 = vsel %vm723, %v722, -inf
        %746 = vmax.xlane.f32.xlu0 %v745
        %v747 = vpop.xlane.xlu0 %746
        %v748 = vsub.f32 %v715, %v726
        %v749 = vsub.f32 %v716, %v729
        %v750 = vsub.f32 %v717, %v732
        %v751 = vsub.f32 %v718, %v735
        %v752 = vsub.f32 %v719, %v738
        %v753 = vsub.f32 %v720, %v741
        %v754 = vsub.f32 %v721, %v744
        %v755 = vsub.f32 %v722, %v747
        %v756 = vmul.f32 %v748, 1.442695
        %v757 = vpow.pop %v756
        %v758 = vmul.f32 %v749, 1.442695
        %v759 = vpow.pop %v758
        %v760 = vmul.f32 %v750, 1.442695
        %v761 = vpow.pop %v760
        %v762 = vmul.f32 %v751, 1.442695
        %v763 = vpow.pop %v762
        %v764 = vmul.f32 %v752, 1.442695
        %v765 = vpow.pop %v764
        %v766 = vmul.f32 %v753, 1.442695
        %v767 = vpow.pop %v766
        %v768 = vmul.f32 %v754, 1.442695
        %v769 = vpow.pop %v768
        %v770 = vmul.f32 %v755, 1.442695
        %v771 = vpow.pop %v770
        %v772 = vsel %vm723, %v757, 0.0
        %773 = vadd.xlane.f32.xlu0 %v772
        %v774 = vpop.xlane.xlu0 %773
        %v775 = vsel %vm723, %v759, 0.0
        %776 = vadd.xlane.f32.xlu0 %v775
        %v777 = vpop.xlane.xlu0 %776
        %v778 = vsel %vm723, %v761, 0.0
        %779 = vadd.xlane.f32.xlu0 %v778
        %v780 = vpop.xlane.xlu0 %779
        %v781 = vsel %vm723, %v763, 0.0
        %782 = vadd.xlane.f32.xlu0 %v781
        %v783 = vpop.xlane.xlu0 %782
        %v784 = vsel %vm723, %v765, 0.0
        %785 = vadd.xlane.f32.xlu0 %v784
        %v786 = vpop.xlane.xlu0 %785
        %v787 = vsel %vm723, %v767, 0.0
        %788 = vadd.xlane.f32.xlu0 %v787
        %v789 = vpop.xlane.xlu0 %788
        %v790 = vsel %vm723, %v769, 0.0
        %791 = vadd.xlane.f32.xlu0 %v790
        %v792 = vpop.xlane.xlu0 %791
        %v793 = vsel %vm723, %v771, 0.0
        %794 = vadd.xlane.f32.xlu0 %v793
        %v795 = vpop.xlane.xlu0 %794
        %v796 = vrcp.pop %v774
        %v797 = vrcp.pop %v777
        %v798 = vrcp.pop %v780
        %v799 = vrcp.pop %v783
        %v800 = vrcp.pop %v786
        %v801 = vrcp.pop %v789
        %v802 = vrcp.pop %v792
        %v803 = vrcp.pop %v795
        %v804 = vmul.f32 %v757, %v796
        %v805 = vmul.f32 %v759, %v797
        %v806 = vmul.f32 %v761, %v798
        %v807 = vmul.f32 %v763, %v799
        %v808 = vmul.f32 %v765, %v800
        %v809 = vmul.f32 %v767, %v801
        %v810 = vmul.f32 %v769, %v802
        %v811 = vmul.f32 %v771, %v803
        %v812 = vpack.c.bf16 %v805, %v804
        %v813 = vpack.c.bf16 %v807, %v806
        %v814 = vpack.c.bf16 %v809, %v808
        %v815 = vpack.c.bf16 %v811, %v810
        %v817 = vsel %vm723, %v812, 0
        %vm819 = vcmask 1043456
        %v820 = vsel %vm819, %v482, 0
        %822 = vmatprep.subr.bf16.mxu0 0
        %823 = vmatpush1.bf16.msra.mxu0 %v820
        %824 = vmatprep.subr.bf16.mxu0 0
        %825 = vmatpush1.bf16.msra.mxu0 0
        %826 = vmatprep.subr.bf16.mxu0 0
        %827 = vmatpush1.bf16.msra.mxu0 0
        %828 = vmatprep.subr.bf16.mxu0 0
        %829 = vmatpush1.bf16.msra.mxu0 0
        %830 = vmatprep.subr.bf16.mxu0 0
        %831 = vmatpush1.bf16.msra.mxu0 0
        %832 = vmatprep.subr.bf16.mxu0 0
        %833 = vmatpush1.bf16.msra.mxu0 0
        %834 = vmatprep.subr.bf16.mxu0 0
        %835 = vmatpush1.bf16.msra.mxu0 0
        %836 = vmatprep.subr.bf16.mxu0 0
        %837 = vmatpush1.bf16.msra.mxu0 0
        %838 = vmatprep.subr.bf16.mxu0 0
        %839 = vmatpush1.bf16.msra.mxu0 0
        %840 = vmatprep.subr.bf16.mxu0 0
        %841 = vmatpush1.bf16.msra.mxu0 0
        %842 = vmatprep.subr.bf16.mxu0 0
        %843 = vmatpush1.bf16.msra.mxu0 0
        %844 = vmatprep.subr.bf16.mxu0 0
        %845 = vmatpush1.bf16.msra.mxu0 0
        %846 = vmatprep.subr.bf16.mxu0 0
        %847 = vmatpush1.bf16.msra.mxu0 0
        %848 = vmatprep.subr.bf16.mxu0 0
        %849 = vmatpush1.bf16.msra.mxu0 0
        %850 = vmatprep.subr.bf16.mxu0 0
        %851 = vmatpush1.bf16.msra.mxu0 0
        %852 = vmatprep.subr.bf16.mxu0 0
        %853 = vmatpush1.bf16.msra.mxu0 0
        %854 = vmatprep.mubr.bf16.mxu0 0
        %855 = vmatmul.mubr.bf16.gmra.mrb[0].mxu0 %v817
        %v856 = vpop.f32.mrb[0].mxu0
        %v857 = vadd.f32 0.0, %v856
        %v858 = vpop.f32.mrb[0].mxu0
        %v859 = vpop.f32.mrb[0].mxu0
        %v860 = vadd.f32 0.0, %v859
        %v861 = vpop.f32.mrb[0].mxu0
        %862 = vdwg.mxu0
        %v864 = vsel %vm723, %v813, 0
        %v866 = vsel %vm819, %v483, 0
        %868 = vmatprep.subr.bf16.mxu0 0
        %869 = vmatpush1.bf16.msra.mxu0 %v866
        %870 = vmatprep.subr.bf16.mxu0 0
        %871 = vmatpush1.bf16.msra.mxu0 0
        %872 = vmatprep.subr.bf16.mxu0 0
        %873 = vmatpush1.bf16.msra.mxu0 0
        %874 = vmatprep.subr.bf16.mxu0 0
        %875 = vmatpush1.bf16.msra.mxu0 0
        %876 = vmatprep.subr.bf16.mxu0 0
        %877 = vmatpush1.bf16.msra.mxu0 0
        %878 = vmatprep.subr.bf16.mxu0 0
        %879 = vmatpush1.bf16.msra.mxu0 0
        %880 = vmatprep.subr.bf16.mxu0 0
        %881 = vmatpush1.bf16.msra.mxu0 0
        %882 = vmatprep.subr.bf16.mxu0 0
        %883 = vmatpush1.bf16.msra.mxu0 0
        %884 = vmatprep.subr.bf16.mxu0 0
        %885 = vmatpush1.bf16.msra.mxu0 0
        %886 = vmatprep.subr.bf16.mxu0 0
        %887 = vmatpush1.bf16.msra.mxu0 0
        %888 = vmatprep.subr.bf16.mxu0 0
        %889 = vmatpush1.bf16.msra.mxu0 0
        %890 = vmatprep.subr.bf16.mxu0 0
        %891 = vmatpush1.bf16.msra.mxu0 0
        %892 = vmatprep.subr.bf16.mxu0 0
        %893 = vmatpush1.bf16.msra.mxu0 0
        %894 = vmatprep.subr.bf16.mxu0 0
        %895 = vmatpush1.bf16.msra.mxu0 0
        %896 = vmatprep.subr.bf16.mxu0 0
        %897 = vmatpush1.bf16.msra.mxu0 0
        %898 = vmatprep.subr.bf16.mxu0 0
        %899 = vmatpush1.bf16.msra.mxu0 0
        %900 = vmatprep.mubr.bf16.mxu0 0
        %901 = vmatmul.mubr.bf16.gmra.mrb[0].mxu0 %v864
        %v902 = vpop.f32.mrb[0].mxu0
        %v903 = vadd.f32 0.0, %v902
        %v904 = vpop.f32.mrb[0].mxu0
        %v905 = vpop.f32.mrb[0].mxu0
        %v906 = vadd.f32 0.0, %v905
        %v907 = vpop.f32.mrb[0].mxu0
        %908 = vdwg.mxu0
        %v910 = vsel %vm723, %v814, 0
        %v912 = vsel %vm819, %v484, 0
        %914 = vmatprep.subr.bf16.mxu0 0
        %915 = vmatpush1.bf16.msra.mxu0 %v912
        %916 = vmatprep.subr.bf16.mxu0 0
        %917 = vmatpush1.bf16.msra.mxu0 0
        %918 = vmatprep.subr.bf16.mxu0 0
        %919 = vmatpush1.bf16.msra.mxu0 0
        %920 = vmatprep.subr.bf16.mxu0 0
        %921 = vmatpush1.bf16.msra.mxu0 0
        %922 = vmatprep.subr.bf16.mxu0 0
        %923 = vmatpush1.bf16.msra.mxu0 0
        %924 = vmatprep.subr.bf16.mxu0 0
        %925 = vmatpush1.bf16.msra.mxu0 0
        %926 = vmatprep.subr.bf16.mxu0 0
        %927 = vmatpush1.bf16.msra.mxu0 0
        %928 = vmatprep.subr.bf16.mxu0 0
        %929 = vmatpush1.bf16.msra.mxu0 0
        %930 = vmatprep.subr.bf16.mxu0 0
        %931 = vmatpush1.bf16.msra.mxu0 0
        %932 = vmatprep.subr.bf16.mxu0 0
        %933 = vmatpush1.bf16.msra.mxu0 0
        %934 = vmatprep.subr.bf16.mxu0 0
        %935 = vmatpush1.bf16.msra.mxu0 0
        %936 = vmatprep.subr.bf16.mxu0 0
        %937 = vmatpush1.bf16.msra.mxu0 0
        %938 = vmatprep.subr.bf16.mxu0 0
        %939 = vmatpush1.bf16.msra.mxu0 0
        %940 = vmatprep.subr.bf16.mxu0 0
        %941 = vmatpush1.bf16.msra.mxu0 0
        %942 = vmatprep.subr.bf16.mxu0 0
        %943 = vmatpush1.bf16.msra.mxu0 0
        %944 = vmatprep.subr.bf16.mxu0 0
        %945 = vmatpush1.bf16.msra.mxu0 0
        %946 = vmatprep.mubr.bf16.mxu0 0
        %947 = vmatmul.mubr.bf16.gmra.mrb[0].mxu0 %v910
        %v948 = vpop.f32.mrb[0].mxu0
        %v949 = vadd.f32 0.0, %v948
        %v950 = vpop.f32.mrb[0].mxu0
        %v951 = vpop.f32.mrb[0].mxu0
        %v952 = vadd.f32 0.0, %v951
        %v953 = vpop.f32.mrb[0].mxu0
        %954 = vdwg.mxu0
        %v956 = vsel %vm723, %v815, 0
        %v958 = vsel %vm819, %v485, 0
        %960 = vmatprep.subr.bf16.mxu0 0
        %961 = vmatpush1.bf16.msra.mxu0 %v958
        %962 = vmatprep.subr.bf16.mxu0 0
        %963 = vmatpush1.bf16.msra.mxu0 0
        %964 = vmatprep.subr.bf16.mxu0 0
        %965 = vmatpush1.bf16.msra.mxu0 0
        %966 = vmatprep.subr.bf16.mxu0 0
        %967 = vmatpush1.bf16.msra.mxu0 0
        %968 = vmatprep.subr.bf16.mxu0 0
        %969 = vmatpush1.bf16.msra.mxu0 0
        %970 = vmatprep.subr.bf16.mxu0 0
        %971 = vmatpush1.bf16.msra.mxu0 0
        %972 = vmatprep.subr.bf16.mxu0 0
        %973 = vmatpush1.bf16.msra.mxu0 0
        %974 = vmatprep.subr.bf16.mxu0 0
        %975 = vmatpush1.bf16.msra.mxu0 0
        %976 = vmatprep.subr.bf16.mxu0 0
        %977 = vmatpush1.bf16.msra.mxu0 0
        %978 = vmatprep.subr.bf16.mxu0 0
        %979 = vmatpush1.bf16.msra.mxu0 0
        %980 = vmatprep.subr.bf16.mxu0 0
        %981 = vmatpush1.bf16.msra.mxu0 0
        %982 = vmatprep.subr.bf16.mxu0 0
        %983 = vmatpush1.bf16.msra.mxu0 0
        %984 = vmatprep.subr.bf16.mxu0 0
        %985 = vmatpush1.bf16.msra.mxu0 0
        %986 = vmatprep.subr.bf16.mxu0 0
        %987 = vmatpush1.bf16.msra.mxu0 0
        %988 = vmatprep.subr.bf16.mxu0 0
        %989 = vmatpush1.bf16.msra.mxu0 0
        %990 = vmatprep.subr.bf16.mxu0 0
        %991 = vmatpush1.bf16.msra.mxu0 0
        %992 = vmatprep.mubr.bf16.mxu0 0
        %993 = vmatmul.mubr.bf16.gmra.mrb[0].mxu0 %v956
        %v994 = vpop.f32.mrb[0].mxu0
        %v995 = vadd.f32 0.0, %v994
        %v996 = vpop.f32.mrb[0].mxu0
        %v997 = vpop.f32.mrb[0].mxu0
        %v998 = vadd.f32 0.0, %v997
        %v999 = vpop.f32.mrb[0].mxu0
        %1000 = vdwg.mxu0
        %v1001 = vpack.c.bf16 %v860, %v857
        %v1002 = vpack.c.bf16 %v906, %v903
        %v1003 = vpack.c.bf16 %v952, %v949
        %v1004 = vpack.c.bf16 %v998, %v995
        %v1006 = vsel %vm486, %v1001, 0
        %1008 = vmatprep.subr.bf16.mxu0 0
        %1009 = vmatpush1.bf16.xpose.msra.mxu0 %v1006
        %1010 = vmatprep.subr.bf16.mxu0 0
        %1011 = vmatpush1.bf16.xpose.msra.mxu0 0
        %1012 = vmatprep.subr.bf16.mxu0 0
        %1013 = vmatpush1.bf16.xpose.msra.mxu0 0
        %1014 = vmatprep.subr.bf16.mxu0 0
        %1015 = vmatpush1.bf16.xpose.msra.mxu0 0
        %1016 = vmatprep.subr.bf16.mxu0 0
        %1017 = vmatpush1.bf16.xpose.msra.mxu0 0
        %1018 = vmatprep.subr.bf16.mxu0 0
        %1019 = vmatpush1.bf16.xpose.msra.mxu0 0
        %1020 = vmatprep.subr.bf16.mxu0 0
        %1021 = vmatpush1.bf16.xpose.msra.mxu0 0
        %1022 = vmatprep.subr.bf16.mxu0 0
        %1023 = vmatpush1.bf16.xpose.msra.mxu0 0
        %1024 = vmatprep.subr.bf16.mxu0 0
        %1025 = vmatpush1.bf16.xpose.msra.mxu0 0
        %1026 = vmatprep.subr.bf16.mxu0 0
        %1027 = vmatpush1.bf16.xpose.msra.mxu0 0
        %1028 = vmatprep.subr.bf16.mxu0 0
        %1029 = vmatpush1.bf16.xpose.msra.mxu0 0
        %1030 = vmatprep.subr.bf16.mxu0 0
        %1031 = vmatpush1.bf16.xpose.msra.mxu0 0
        %1032 = vmatprep.subr.bf16.mxu0 0
        %1033 = vmatpush1.bf16.xpose.msra.mxu0 0
        %1034 = vmatprep.subr.bf16.mxu0 0
        %1035 = vmatpush1.bf16.xpose.msra.mxu0 0
        %1036 = vmatprep.subr.bf16.mxu0 0
        %1037 = vmatpush1.bf16.xpose.msra.mxu0 0
        %1038 = vmatprep.subr.bf16.mxu0 0
        %1039 = vmatpush1.bf16.xpose.msra.mxu0 0
        %1040 = vmatprep.mubr.bf16.mxu0 0
        %1041 = vmatmul.mubr.bf16.gmra.mrb[0].mxu0 %v491
        %v1042 = vpop.f32.mrb[0].mxu0
        %v1043 = vadd.f32 0.0, %v1042
        %v1044 = vpop.f32.mrb[0].mxu0
        %v1045 = vpop.f32.mrb[0].mxu0
        %v1046 = vpop.f32.mrb[0].mxu0
        %1047 = vdwg.mxu0
        %v1049 = vsel %vm486, %v1002, 0
        %1051 = vmatprep.subr.bf16.mxu0 0
        %1052 = vmatpush1.bf16.xpose.msra.mxu0 %v1049
        %1053 = vmatprep.subr.bf16.mxu0 0
        %1054 = vmatpush1.bf16.xpose.msra.mxu0 0
        %1055 = vmatprep.subr.bf16.mxu0 0
        %1056 = vmatpush1.bf16.xpose.msra.mxu0 0
        %1057 = vmatprep.subr.bf16.mxu0 0
        %1058 = vmatpush1.bf16.xpose.msra.mxu0 0
        %1059 = vmatprep.subr.bf16.mxu0 0
        %1060 = vmatpush1.bf16.xpose.msra.mxu0 0
        %1061 = vmatprep.subr.bf16.mxu0 0
        %1062 = vmatpush1.bf16.xpose.msra.mxu0 0
        %1063 = vmatprep.subr.bf16.mxu0 0
        %1064 = vmatpush1.bf16.xpose.msra.mxu0 0
        %1065 = vmatprep.subr.bf16.mxu0 0
        %1066 = vmatpush1.bf16.xpose.msra.mxu0 0
        %1067 = vmatprep.subr.bf16.mxu0 0
        %1068 = vmatpush1.bf16.xpose.msra.mxu0 0
        %1069 = vmatprep.subr.bf16.mxu0 0
        %1070 = vmatpush1.bf16.xpose.msra.mxu0 0
        %1071 = vmatprep.subr.bf16.mxu0 0
        %1072 = vmatpush1.bf16.xpose.msra.mxu0 0
        %1073 = vmatprep.subr.bf16.mxu0 0
        %1074 = vmatpush1.bf16.xpose.msra.mxu0 0
        %1075 = vmatprep.subr.bf16.mxu0 0
        %1076 = vmatpush1.bf16.xpose.msra.mxu0 0
        %1077 = vmatprep.subr.bf16.mxu0 0
        %1078 = vmatpush1.bf16.xpose.msra.mxu0 0
        %1079 = vmatprep.subr.bf16.mxu0 0
        %1080 = vmatpush1.bf16.xpose.msra.mxu0 0
        %1081 = vmatprep.subr.bf16.mxu0 0
        %1082 = vmatpush1.bf16.xpose.msra.mxu0 0
        %1083 = vmatprep.mubr.bf16.mxu0 0
        %1084 = vmatmul.mubr.bf16.gmra.mrb[0].mxu0 %v538
        %v1085 = vpop.f32.mrb[0].mxu0
        %v1086 = vadd.f32 0.0, %v1085
        %v1087 = vpop.f32.mrb[0].mxu0
        %v1088 = vpop.f32.mrb[0].mxu0
        %v1089 = vpop.f32.mrb[0].mxu0
        %1090 = vdwg.mxu0
        %v1092 = vsel %vm486, %v1003, 0
        %1094 = vmatprep.subr.bf16.mxu0 0
        %1095 = vmatpush1.bf16.xpose.msra.mxu0 %v1092
        %1096 = vmatprep.subr.bf16.mxu0 0
        %1097 = vmatpush1.bf16.xpose.msra.mxu0 0
        %1098 = vmatprep.subr.bf16.mxu0 0
        %1099 = vmatpush1.bf16.xpose.msra.mxu0 0
        %1100 = vmatprep.subr.bf16.mxu0 0
        %1101 = vmatpush1.bf16.xpose.msra.mxu0 0
        %1102 = vmatprep.subr.bf16.mxu0 0
        %1103 = vmatpush1.bf16.xpose.msra.mxu0 0
        %1104 = vmatprep.subr.bf16.mxu0 0
        %1105 = vmatpush1.bf16.xpose.msra.mxu0 0
        %1106 = vmatprep.subr.bf16.mxu0 0
        %1107 = vmatpush1.bf16.xpose.msra.mxu0 0
        %1108 = vmatprep.subr.bf16.mxu0 0
        %1109 = vmatpush1.bf16.xpose.msra.mxu0 0
        %1110 = vmatprep.subr.bf16.mxu0 0
        %1111 = vmatpush1.bf16.xpose.msra.mxu0 0
        %1112 = vmatprep.subr.bf16.mxu0 0
        %1113 = vmatpush1.bf16.xpose.msra.mxu0 0
        %1114 = vmatprep.subr.bf16.mxu0 0
        %1115 = vmatpush1.bf16.xpose.msra.mxu0 0
        %1116 = vmatprep.subr.bf16.mxu0 0
        %1117 = vmatpush1.bf16.xpose.msra.mxu0 0
        %1118 = vmatprep.subr.bf16.mxu0 0
        %1119 = vmatpush1.bf16.xpose.msra.mxu0 0
        %1120 = vmatprep.subr.bf16.mxu0 0
        %1121 = vmatpush1.bf16.xpose.msra.mxu0 0
        %1122 = vmatprep.subr.bf16.mxu0 0
        %1123 = vmatpush1.bf16.xpose.msra.mxu0 0
        %1124 = vmatprep.subr.bf16.mxu0 0
        %1125 = vmatpush1.bf16.xpose.msra.mxu0 0
        %1126 = vmatprep.mubr.bf16.mxu0 0
        %1127 = vmatmul.mubr.bf16.gmra.mrb[0].mxu0 %v585
        %v1128 = vpop.f32.mrb[0].mxu0
        %v1129 = vadd.f32 0.0, %v1128
        %v1130 = vpop.f32.mrb[0].mxu0
        %v1131 = vpop.f32.mrb[0].mxu0
        %v1132 = vpop.f32.mrb[0].mxu0
        %1133 = vdwg.mxu0
        %v1135 = vsel %vm486, %v1004, 0
        %1137 = vmatprep.subr.bf16.mxu0 0
        %1138 = vmatpush1.bf16.xpose.msra.mxu0 %v1135
        %1139 = vmatprep.subr.bf16.mxu0 0
        %1140 = vmatpush1.bf16.xpose.msra.mxu0 0
        %1141 = vmatprep.subr.bf16.mxu0 0
        %1142 = vmatpush1.bf16.xpose.msra.mxu0 0
        %1143 = vmatprep.subr.bf16.mxu0 0
        %1144 = vmatpush1.bf16.xpose.msra.mxu0 0
        %1145 = vmatprep.subr.bf16.mxu0 0
        %1146 = vmatpush1.bf16.xpose.msra.mxu0 0
        %1147 = vmatprep.subr.bf16.mxu0 0
        %1148 = vmatpush1.bf16.xpose.msra.mxu0 0
        %1149 = vmatprep.subr.bf16.mxu0 0
        %1150 = vmatpush1.bf16.xpose.msra.mxu0 0
        %1151 = vmatprep.subr.bf16.mxu0 0
        %1152 = vmatpush1.bf16.xpose.msra.mxu0 0
        %1153 = vmatprep.subr.bf16.mxu0 0
        %1154 = vmatpush1.bf16.xpose.msra.mxu0 0
        %1155 = vmatprep.subr.bf16.mxu0 0
        %1156 = vmatpush1.bf16.xpose.msra.mxu0 0
        %1157 = vmatprep.subr.bf16.mxu0 0
        %1158 = vmatpush1.bf16.xpose.msra.mxu0 0
        %1159 = vmatprep.subr.bf16.mxu0 0
        %1160 = vmatpush1.bf16.xpose.msra.mxu0 0
        %1161 = vmatprep.subr.bf16.mxu0 0
        %1162 = vmatpush1.bf16.xpose.msra.mxu0 0
        %1163 = vmatprep.subr.bf16.mxu0 0
        %1164 = vmatpush1.bf16.xpose.msra.mxu0 0
        %1165 = vmatprep.subr.bf16.mxu0 0
        %1166 = vmatpush1.bf16.xpose.msra.mxu0 0
        %1167 = vmatprep.subr.bf16.mxu0 0
        %1168 = vmatpush1.bf16.xpose.msra.mxu0 0
        %1169 = vmatprep.mubr.bf16.mxu0 0
        %1170 = vmatmul.mubr.bf16.gmra.mrb[0].mxu0 %v632
        %v1171 = vpop.f32.mrb[0].mxu0
        %v1172 = vadd.f32 0.0, %v1171
        %v1173 = vpop.f32.mrb[0].mxu0
        %v1174 = vpop.f32.mrb[0].mxu0
        %v1175 = vpop.f32.mrb[0].mxu0
        %1176 = vdwg.mxu0
        %v1177 = vmul.f32 %v1043, 0.17677669
        %v1178 = vmul.f32 %v1086, 0.17677669
        %v1179 = vmul.f32 %v1129, 0.17677669
        %v1180 = vmul.f32 %v1172, 0.17677669
        %vm1181 = vcmask 130048
        %v1182 = vsel %vm1181, %v1177, -inf
        %1183 = vmax.xlane.f32.xlu0 %v1182
        %v1184 = vpop.xlane.xlu0 %1183
        %v1185 = vsel %vm1181, %v1178, -inf
        %1186 = vmax.xlane.f32.xlu0 %v1185
        %v1187 = vpop.xlane.xlu0 %1186
        %v1188 = vsel %vm1181, %v1179, -inf
        %1189 = vmax.xlane.f32.xlu0 %v1188
        %v1190 = vpop.xlane.xlu0 %1189
        %v1191 = vsel %vm1181, %v1180, -inf
        %1192 = vmax.xlane.f32.xlu0 %v1191
        %v1193 = vpop.xlane.xlu0 %1192
        %v1194 = vsub.f32 %v1177, %v1184
        %v1195 = vsub.f32 %v1178, %v1187
        %v1196 = vsub.f32 %v1179, %v1190
        %v1197 = vsub.f32 %v1180, %v1193
        %v1198 = vmul.f32 %v1194, 1.442695
        %v1199 = vpow.pop %v1198
        %v1200 = vmul.f32 %v1195, 1.442695
        %v1201 = vpow.pop %v1200
        %v1202 = vmul.f32 %v1196, 1.442695
        %v1203 = vpow.pop %v1202
        %v1204 = vmul.f32 %v1197, 1.442695
        %v1205 = vpow.pop %v1204
        %v1206 = vsel %vm1181, %v1199, 0.0
        %1207 = vadd.xlane.f32.xlu0 %v1206
        %v1208 = vpop.xlane.xlu0 %1207
        %v1209 = vsel %vm1181, %v1201, 0.0
        %1210 = vadd.xlane.f32.xlu0 %v1209
        %v1211 = vpop.xlane.xlu0 %1210
        %v1212 = vsel %vm1181, %v1203, 0.0
        %1213 = vadd.xlane.f32.xlu0 %v1212
        %v1214 = vpop.xlane.xlu0 %1213
        %v1215 = vsel %vm1181, %v1205, 0.0
        %1216 = vadd.xlane.f32.xlu0 %v1215
        %v1217 = vpop.xlane.xlu0 %1216
        %v1218 = vrcp.pop %v1208
        %v1219 = vrcp.pop %v1211
        %v1220 = vrcp.pop %v1214
        %v1221 = vrcp.pop %v1217
        %v1222 = vmul.f32 %v1199, %v1218
        %v1223 = vmul.f32 %v1201, %v1219
        %v1224 = vmul.f32 %v1203, %v1220
        %v1225 = vmul.f32 %v1205, %v1221
        %v1226 = vpack.c.bf16 %v1222, %v1222
        %v1227 = vpack.c.bf16 %v1223, %v1223
        %v1228 = vpack.c.bf16 %v1224, %v1224
        %v1229 = vpack.c.bf16 %v1225, %v1225
        %v1231 = vsel %vm1181, %v1226, 0
        %1233 = vmatprep.subr.bf16.mxu0 0
        %1234 = vmatpush1.bf16.msra.mxu0 %v1001
        %1235 = vmatprep.subr.bf16.mxu0 0
        %1236 = vmatpush1.bf16.msra.mxu0 0
        %1237 = vmatprep.subr.bf16.mxu0 0
        %1238 = vmatpush1.bf16.msra.mxu0 0
        %1239 = vmatprep.subr.bf16.mxu0 0
        %1240 = vmatpush1.bf16.msra.mxu0 0
        %1241 = vmatprep.subr.bf16.mxu0 0
        %1242 = vmatpush1.bf16.msra.mxu0 0
        %1243 = vmatprep.subr.bf16.mxu0 0
        %1244 = vmatpush1.bf16.msra.mxu0 0
        %1245 = vmatprep.subr.bf16.mxu0 0
        %1246 = vmatpush1.bf16.msra.mxu0 0
        %1247 = vmatprep.subr.bf16.mxu0 0
        %1248 = vmatpush1.bf16.msra.mxu0 0
        %1249 = vmatprep.subr.bf16.mxu0 0
        %1250 = vmatpush1.bf16.msra.mxu0 0
        %1251 = vmatprep.subr.bf16.mxu0 0
        %1252 = vmatpush1.bf16.msra.mxu0 0
        %1253 = vmatprep.subr.bf16.mxu0 0
        %1254 = vmatpush1.bf16.msra.mxu0 0
        %1255 = vmatprep.subr.bf16.mxu0 0
        %1256 = vmatpush1.bf16.msra.mxu0 0
        %1257 = vmatprep.subr.bf16.mxu0 0
        %1258 = vmatpush1.bf16.msra.mxu0 0
        %1259 = vmatprep.subr.bf16.mxu0 0
        %1260 = vmatpush1.bf16.msra.mxu0 0
        %1261 = vmatprep.subr.bf16.mxu0 0
        %1262 = vmatpush1.bf16.msra.mxu0 0
        %1263 = vmatprep.subr.bf16.mxu0 0
        %1264 = vmatpush1.bf16.msra.mxu0 0
        %1265 = vmatprep.mubr.bf16.mxu0 0
        %1266 = vmatmul.mubr.bf16.gmra.mrb[0].mxu0 %v1231
        %v1267 = vpop.f32.mrb[0].mxu0
        %v1268 = vadd.f32 0.0, %v1267
        %v1269 = vpop.f32.mrb[0].mxu0
        %v1270 = vpop.f32.mrb[0].mxu0
        %v1271 = vpop.f32.mrb[0].mxu0
        %1272 = vdwg.mxu0
        %v1274 = vsel %vm1181, %v1227, 0
        %1276 = vmatprep.subr.bf16.mxu0 0
        %1277 = vmatpush1.bf16.msra.mxu0 %v1002
        %1278 = vmatprep.subr.bf16.mxu0 0
        %1279 = vmatpush1.bf16.msra.mxu0 0
        %1280 = vmatprep.subr.bf16.mxu0 0
        %1281 = vmatpush1.bf16.msra.mxu0 0
        %1282 = vmatprep.subr.bf16.mxu0 0
        %1283 = vmatpush1.bf16.msra.mxu0 0
        %1284 = vmatprep.subr.bf16.mxu0 0
        %1285 = vmatpush1.bf16.msra.mxu0 0
        %1286 = vmatprep.subr.bf16.mxu0 0
        %1287 = vmatpush1.bf16.msra.mxu0 0
        %1288 = vmatprep.subr.bf16.mxu0 0
        %1289 = vmatpush1.bf16.msra.mxu0 0
        %1290 = vmatprep.subr.bf16.mxu0 0
        %1291 = vmatpush1.bf16.msra.mxu0 0
        %1292 = vmatprep.subr.bf16.mxu0 0
        %1293 = vmatpush1.bf16.msra.mxu0 0
        %1294 = vmatprep.subr.bf16.mxu0 0
        %1295 = vmatpush1.bf16.msra.mxu0 0
        %1296 = vmatprep.subr.bf16.mxu0 0
        %1297 = vmatpush1.bf16.msra.mxu0 0
        %1298 = vmatprep.subr.bf16.mxu0 0
        %1299 = vmatpush1.bf16.msra.mxu0 0
        %1300 = vmatprep.subr.bf16.mxu0 0
        %1301 = vmatpush1.bf16.msra.mxu0 0
        %1302 = vmatprep.subr.bf16.mxu0 0
        %1303 = vmatpush1.bf16.msra.mxu0 0
        %1304 = vmatprep.subr.bf16.mxu0 0
        %1305 = vmatpush1.bf16.msra.mxu0 0
        %1306 = vmatprep.subr.bf16.mxu0 0
        %1307 = vmatpush1.bf16.msra.mxu0 0
        %1308 = vmatprep.mubr.bf16.mxu0 0
        %1309 = vmatmul.mubr.bf16.gmra.mrb[0].mxu0 %v1274
        %v1310 = vpop.f32.mrb[0].mxu0
        %v1311 = vadd.f32 0.0, %v1310
        %v1312 = vpop.f32.mrb[0].mxu0
        %v1313 = vpop.f32.mrb[0].mxu0
        %v1314 = vpop.f32.mrb[0].mxu0
        %1315 = vdwg.mxu0
        %v1317 = vsel %vm1181, %v1228, 0
        %1319 = vmatprep.subr.bf16.mxu0 0
        %1320 = vmatpush1.bf16.msra.mxu0 %v1003
        %1321 = vmatprep.subr.bf16.mxu0 0
        %1322 = vmatpush1.bf16.msra.mxu0 0
        %1323 = vmatprep.subr.bf16.mxu0 0
        %1324 = vmatpush1.bf16.msra.mxu0 0
        %1325 = vmatprep.subr.bf16.mxu0 0
        %1326 = vmatpush1.bf16.msra.mxu0 0
        %1327 = vmatprep.subr.bf16.mxu0 0
        %1328 = vmatpush1.bf16.msra.mxu0 0
        %1329 = vmatprep.subr.bf16.mxu0 0
        %1330 = vmatpush1.bf16.msra.mxu0 0
        %1331 = vmatprep.subr.bf16.mxu0 0
        %1332 = vmatpush1.bf16.msra.mxu0 0
        %1333 = vmatprep.subr.bf16.mxu0 0
        %1334 = vmatpush1.bf16.msra.mxu0 0
        %1335 = vmatprep.subr.bf16.mxu0 0
        %1336 = vmatpush1.bf16.msra.mxu0 0
        %1337 = vmatprep.subr.bf16.mxu0 0
        %1338 = vmatpush1.bf16.msra.mxu0 0
        %1339 = vmatprep.subr.bf16.mxu0 0
        %1340 = vmatpush1.bf16.msra.mxu0 0
        %1341 = vmatprep.subr.bf16.mxu0 0
        %1342 = vmatpush1.bf16.msra.mxu0 0
        %1343 = vmatprep.subr.bf16.mxu0 0
        %1344 = vmatpush1.bf16.msra.mxu0 0
        %1345 = vmatprep.subr.bf16.mxu0 0
        %1346 = vmatpush1.bf16.msra.mxu0 0
        %1347 = vmatprep.subr.bf16.mxu0 0
        %1348 = vmatpush1.bf16.msra.mxu0 0
        %1349 = vmatprep.subr.bf16.mxu0 0
        %1350 = vmatpush1.bf16.msra.mxu0 0
        %1351 = vmatprep.mubr.bf16.mxu0 0
        %1352 = vmatmul.mubr.bf16.gmra.mrb[0].mxu0 %v1317
        %v1353 = vpop.f32.mrb[0].mxu0
        %v1354 = vadd.f32 0.0, %v1353
        %v1355 = vpop.f32.mrb[0].mxu0
        %v1356 = vpop.f32.mrb[0].mxu0
        %v1357 = vpop.f32.mrb[0].mxu0
        %1358 = vdwg.mxu0
        %v1360 = vsel %vm1181, %v1229, 0
        %1362 = vmatprep.subr.bf16.mxu0 0
        %1363 = vmatpush1.bf16.msra.mxu0 %v1004
        %1364 = vmatprep.subr.bf16.mxu0 0
        %1365 = vmatpush1.bf16.msra.mxu0 0
        %1366 = vmatprep.subr.bf16.mxu0 0
        %1367 = vmatpush1.bf16.msra.mxu0 0
        %1368 = vmatprep.subr.bf16.mxu0 0
        %1369 = vmatpush1.bf16.msra.mxu0 0
        %1370 = vmatprep.subr.bf16.mxu0 0
        %1371 = vmatpush1.bf16.msra.mxu0 0
        %1372 = vmatprep.subr.bf16.mxu0 0
        %1373 = vmatpush1.bf16.msra.mxu0 0
        %1374 = vmatprep.subr.bf16.mxu0 0
        %1375 = vmatpush1.bf16.msra.mxu0 0
        %1376 = vmatprep.subr.bf16.mxu0 0
        %1377 = vmatpush1.bf16.msra.mxu0 0
        %1378 = vmatprep.subr.bf16.mxu0 0
        %1379 = vmatpush1.bf16.msra.mxu0 0
        %1380 = vmatprep.subr.bf16.mxu0 0
        %1381 = vmatpush1.bf16.msra.mxu0 0
        %1382 = vmatprep.subr.bf16.mxu0 0
        %1383 = vmatpush1.bf16.msra.mxu0 0
        %1384 = vmatprep.subr.bf16.mxu0 0
        %1385 = vmatpush1.bf16.msra.mxu0 0
        %1386 = vmatprep.subr.bf16.mxu0 0
        %1387 = vmatpush1.bf16.msra.mxu0 0
        %1388 = vmatprep.subr.bf16.mxu0 0
        %1389 = vmatpush1.bf16.msra.mxu0 0
        %1390 = vmatprep.subr.bf16.mxu0 0
        %1391 = vmatpush1.bf16.msra.mxu0 0
        %1392 = vmatprep.subr.bf16.mxu0 0
        %1393 = vmatpush1.bf16.msra.mxu0 0
        %1394 = vmatprep.mubr.bf16.mxu0 0
        %1395 = vmatmul.mubr.bf16.gmra.mrb[0].mxu0 %v1360
        %v1396 = vpop.f32.mrb[0].mxu0
        %v1397 = vadd.f32 0.0, %v1396
        %v1398 = vpop.f32.mrb[0].mxu0
        %v1399 = vpop.f32.mrb[0].mxu0
        %v1400 = vpop.f32.mrb[0].mxu0
        %1401 = vdwg.mxu0
        %v1402 = vsel %vm486, %v857, 0.0
        %v1403 = vsel %vm486, %v860, 0.0
        %v1404 = vadd.f32 %v1402, %v1403
        %v1405 = vrot.slane %v1404, 4
        %v1406 = vadd.f32 %v1404, %v1405
        %v1407 = vrot.slane %v1406, 2
        %v1408 = vadd.f32 %v1406, %v1407
        %v1409 = vrot.slane %v1408, 1
        %v1410 = vadd.f32 %v1408, %v1409
        %v1411 = vsel %vm486, %v903, 0.0
        %v1412 = vsel %vm486, %v906, 0.0
        %v1413 = vadd.f32 %v1411, %v1412
        %v1414 = vrot.slane %v1413, 4
        %v1415 = vadd.f32 %v1413, %v1414
        %v1416 = vrot.slane %v1415, 2
        %v1417 = vadd.f32 %v1415, %v1416
        %v1418 = vrot.slane %v1417, 1
        %v1419 = vadd.f32 %v1417, %v1418
        %v1420 = vsel %vm486, %v949, 0.0
        %v1421 = vsel %vm486, %v952, 0.0
        %v1422 = vadd.f32 %v1420, %v1421
        %v1423 = vrot.slane %v1422, 4
        %v1424 = vadd.f32 %v1422, %v1423
        %v1425 = vrot.slane %v1424, 2
        %v1426 = vadd.f32 %v1424, %v1425
        %v1427 = vrot.slane %v1426, 1
        %v1428 = vadd.f32 %v1426, %v1427
        %v1429 = vsel %vm486, %v995, 0.0
        %v1430 = vsel %vm486, %v998, 0.0
        %v1431 = vadd.f32 %v1429, %v1430
        %v1432 = vrot.slane %v1431, 4
        %v1433 = vadd.f32 %v1431, %v1432
        %v1434 = vrot.slane %v1433, 2
        %v1435 = vadd.f32 %v1433, %v1434
        %v1436 = vrot.slane %v1435, 1
        %v1437 = vadd.f32 %v1435, %v1436
        %v1438 = vrcp.pop 16.0
        %v1439 = vmul.f32 %v1410, %v1438
        %v1440 = vmul.f32 %v1419, %v1438
        %v1441 = vmul.f32 %v1428, %v1438
        %v1442 = vmul.f32 %v1437, %v1438
        %v1443 = vsel %vm486, %v1268, 0.0
        %v1444 = vrot.slane %v1443, 4
        %v1445 = vadd.f32 %v1443, %v1444
        %v1446 = vrot.slane %v1445, 2
        %v1447 = vadd.f32 %v1445, %v1446
        %v1448 = vrot.slane %v1447, 1
        %v1449 = vadd.f32 %v1447, %v1448
        %v1450 = vsel %vm486, %v1311, 0.0
        %v1451 = vrot.slane %v1450, 4
        %v1452 = vadd.f32 %v1450, %v1451
        %v1453 = vrot.slane %v1452, 2
        %v1454 = vadd.f32 %v1452, %v1453
        %v1455 = vrot.slane %v1454, 1
        %v1456 = vadd.f32 %v1454, %v1455
        %v1457 = vsel %vm486, %v1354, 0.0
        %v1458 = vrot.slane %v1457, 4
        %v1459 = vadd.f32 %v1457, %v1458
        %v1460 = vrot.slane %v1459, 2
        %v1461 = vadd.f32 %v1459, %v1460
        %v1462 = vrot.slane %v1461, 1
        %v1463 = vadd.f32 %v1461, %v1462
        %v1464 = vsel %vm486, %v1397, 0.0
        %v1465 = vrot.slane %v1464, 4
        %v1466 = vadd.f32 %v1464, %v1465
        %v1467 = vrot.slane %v1466, 2
        %v1468 = vadd.f32 %v1466, %v1467
        %v1469 = vrot.slane %v1468, 1
        %v1470 = vadd.f32 %v1468, %v1469
        %v1471 = vrcp.pop 8.0
        %v1472 = vmul.f32 %v1449, %v1471
        %v1473 = vmul.f32 %v1456, %v1471
        %v1474 = vmul.f32 %v1463, %v1471
        %v1475 = vmul.f32 %v1470, %v1471
        %v1476 = vadd.f32 %v1439, %v1472
        %v1477 = vadd.f32 %v1440, %v1473
        %v1478 = vadd.f32 %v1441, %v1474
        %v1479 = vadd.f32 %v1442, %v1475
        %v1480 = vpack.c.bf16 %v1476, %v1476
        %v1481 = vpack.c.bf16 %v1477, %v1477
        %v1482 = vpack.c.bf16 %v1478, %v1478
        %v1483 = vpack.c.bf16 %v1479, %v1479
        %v1484 = vld [vmem:[#allocation11] sm:$0xff]
        %v1485 = vld [vmem:[#allocation11 + $0x8] sm:$0xff]
        %v1486 = vld [vmem:[#allocation11 + $0x10] sm:$0xff]
        %v1487 = vld [vmem:[#allocation11 + $0x18] sm:$0xff]
        %v1488 = vpack.c.bf16 %v1485, %v1484
        %v1489 = vpack.c.bf16 %v1487, %v1486
        %v1490 = vld [vmem:[%s6] sm:$0x1]
        %v1492 = vlaneseq
        %v1493 = vshrl.u32 %v1492, 7
        %v1494 = vsub.s32 0, %v1493
        %v1495 = vrot.slane %v1490, %v1494
        %v1501 = vunpack.c.l.b16 %v1480
        %v1502 = vunpack.c.l.b16 %v1481
        %v1503 = vunpack.c.l.b16 %v1482
        %v1504 = vunpack.c.l.b16 %v1483
        %vm1505 = vcmask 1041409
        %v1506 = vsel %vm1505, %v1502, %v1501
        %vm1507 = vcmask 1042434
        %v1508 = vsel %vm1507, %v1503, %v1506
        %vm1509 = vcmask 1043459
        %v1510 = vsel %vm1509, %v1504, %v1508
        %v1511 = vpack.c.b16 %v1510, %v1510
        %v1513 = vsel %vm486, %v1511, 0
        %1515 = vmatprep.subr.bf16.mxu0 0
        %1516 = vmatpush1.bf16.msra.mxu0 %v1488
        %1517 = vmatprep.subr.bf16.mxu0 0
        %1518 = vmatpush1.bf16.msra.mxu0 %v1489
        %1519 = vmatprep.subr.bf16.mxu0 0
        %1520 = vmatpush1.bf16.msra.mxu0 0
        %1521 = vmatprep.subr.bf16.mxu0 0
        %1522 = vmatpush1.bf16.msra.mxu0 0
        %1523 = vmatprep.subr.bf16.mxu0 0
        %1524 = vmatpush1.bf16.msra.mxu0 0
        %1525 = vmatprep.subr.bf16.mxu0 0
        %1526 = vmatpush1.bf16.msra.mxu0 0
        %1527 = vmatprep.subr.bf16.mxu0 0
        %1528 = vmatpush1.bf16.msra.mxu0 0
        %1529 = vmatprep.subr.bf16.mxu0 0
        %1530 = vmatpush1.bf16.msra.mxu0 0
        %1531 = vmatprep.subr.bf16.mxu0 0
        %1532 = vmatpush1.bf16.msra.mxu0 0
        %1533 = vmatprep.subr.bf16.mxu0 0
        %1534 = vmatpush1.bf16.msra.mxu0 0
        %1535 = vmatprep.subr.bf16.mxu0 0
        %1536 = vmatpush1.bf16.msra.mxu0 0
        %1537 = vmatprep.subr.bf16.mxu0 0
        %1538 = vmatpush1.bf16.msra.mxu0 0
        %1539 = vmatprep.subr.bf16.mxu0 0
        %1540 = vmatpush1.bf16.msra.mxu0 0
        %1541 = vmatprep.subr.bf16.mxu0 0
        %1542 = vmatpush1.bf16.msra.mxu0 0
        %1543 = vmatprep.subr.bf16.mxu0 0
        %1544 = vmatpush1.bf16.msra.mxu0 0
        %1545 = vmatprep.subr.bf16.mxu0 0
        %1546 = vmatpush1.bf16.msra.mxu0 0
        %1547 = vmatprep.mubr.bf16.mxu0 0
        %1548 = vmatmul.mubr.bf16.gmra.mrb[0].mxu0 %v1513
        %v1549 = vpop.f32.mrb[0].mxu0
        %v1550 = vadd.f32 %v1495, %v1549
        %v1551 = vpop.f32.mrb[0].mxu0
        %v1552 = vpop.f32.mrb[0].mxu0
        %v1553 = vpop.f32.mrb[0].mxu0
        %1554 = vdwg.mxu0
        %v1555 = vtanh.pop %v1550
        %v1558 = vunpack.c.l.s4 1966171168
        %v1559 = vunpack.c.0.s8 %v1558
        %v1560 = vlaneseq
        %v1561 = vshrl.u32 %v1560, 7
        %v1562 = vsub.s32 %v1559, %v1561
        %v1563 = vrot.slane %v1555, %v1562
        %v1564 = vcombine.high %v1563, %v1563
        %v1566 = vunpack.c.l.s4 1966171168
        %v1567 = vunpack.c.0.s8 %v1566
        %v1568 = vlaneseq
        %v1569 = vshrl.u32 %v1568, 7
        %v1570 = vsub.s32 %v1567, %v1569
        %v1571 = vrot.slane %v1563, %v1570
        %v1573 = vunpack.c.l.s4 1966171168
        %v1574 = vunpack.c.0.s8 %v1573
        %v1575 = vlaneseq
        %v1576 = vshrl.u32 %v1575, 7
        %v1577 = vsub.s32 %v1574, %v1576
        %v1578 = vrot.slane %v1564, %v1577
        %v1579 = vcombine.high %v1571, %v1571
        %v1580 = vcombine.high %v1578, %v1578
        %vm1585 = vcmask 253952
        %1586 = vst.msk [vmem:[#allocation2] sm:$0x1] %vm1585, %v1439
        %1587 = vst.msk [vmem:[#allocation2 + $0x4] sm:$0x1] %vm1585, %v1440
        %1588 = vst.msk [vmem:[#allocation2 + $0x8] sm:$0x1] %vm1585, %v1441
        %1589 = vst.msk [vmem:[#allocation2 + $0xc] sm:$0x1] %vm1585, %v1442
        %1590 = vst.msk [vmem:[#allocation2 + $0x1] sm:$0x1] %vm1585, %v1472
        %1591 = vst.msk [vmem:[#allocation2 + $0x5] sm:$0x1] %vm1585, %v1473
        %1592 = vst.msk [vmem:[#allocation2 + $0x9] sm:$0x1] %vm1585, %v1474
        %1593 = vst.msk [vmem:[#allocation2 + $0xd] sm:$0x1] %vm1585, %v1475
        %1594 = vst.msk [vmem:[#allocation2 + $0x2] sm:$0x1] %vm1585, %v1571
        %1595 = vst.msk [vmem:[#allocation2 + $0x6] sm:$0x1] %vm1585, %v1578
        %1596 = vst.msk [vmem:[#allocation2 + $0xa] sm:$0x1] %vm1585, %v1579
        %1597 = vst.msk [vmem:[#allocation2 + $0xe] sm:$0x1] %vm1585, %v1580
        %v1598 = vld [vmem:[#allocation2] sm:$0x7]
        %v1599 = vld [vmem:[#allocation2 + $0x4] sm:$0x7]
        %v1600 = vld [vmem:[#allocation2 + $0x8] sm:$0x7]
        %v1601 = vld [vmem:[#allocation2 + $0xc] sm:$0x7]
        %v1602 = vpack.c.bf16 %v1598, %v1598
        %v1603 = vpack.c.bf16 %v1599, %v1599
        %v1604 = vpack.c.bf16 %v1600, %v1600
        %v1605 = vpack.c.bf16 %v1601, %v1601
        %v1606 = vpack.c.bf16 %v466, %v466
        %v1607 = vpack.c.bf16 %v467, %v467
        %v1608 = vpack.c.bf16 %v468, %v468
        %v1609 = vpack.c.bf16 %v469, %v469
        %v1611 = vsel %vm486, %v1602, 0
        %v1614 = vsel %vm486, %v1606, 0
        %1616 = vmatprep.subr.bf16.mxu0 0
        %1617 = vmatpush1.bf16.xpose.msra.mxu0 %v1614
        %1618 = vmatprep.subr.bf16.mxu0 0
        %1619 = vmatpush1.bf16.xpose.msra.mxu0 0
        %1620 = vmatprep.subr.bf16.mxu0 0
        %1621 = vmatpush1.bf16.xpose.msra.mxu0 0
        %1622 = vmatprep.subr.bf16.mxu0 0
        %1623 = vmatpush1.bf16.xpose.msra.mxu0 0
        %1624 = vmatprep.subr.bf16.mxu0 0
        %1625 = vmatpush1.bf16.xpose.msra.mxu0 0
        %1626 = vmatprep.subr.bf16.mxu0 0
        %1627 = vmatpush1.bf16.xpose.msra.mxu0 0
        %1628 = vmatprep.subr.bf16.mxu0 0
        %1629 = vmatpush1.bf16.xpose.msra.mxu0 0
        %1630 = vmatprep.subr.bf16.mxu0 0
        %1631 = vmatpush1.bf16.xpose.msra.mxu0 0
        %1632 = vmatprep.subr.bf16.mxu0 0
        %1633 = vmatpush1.bf16.xpose.msra.mxu0 0
        %1634 = vmatprep.subr.bf16.mxu0 0
        %1635 = vmatpush1.bf16.xpose.msra.mxu0 0
        %1636 = vmatprep.subr.bf16.mxu0 0
        %1637 = vmatpush1.bf16.xpose.msra.mxu0 0
        %1638 = vmatprep.subr.bf16.mxu0 0
        %1639 = vmatpush1.bf16.xpose.msra.mxu0 0
        %1640 = vmatprep.subr.bf16.mxu0 0
        %1641 = vmatpush1.bf16.xpose.msra.mxu0 0
        %1642 = vmatprep.subr.bf16.mxu0 0
        %1643 = vmatpush1.bf16.xpose.msra.mxu0 0
        %1644 = vmatprep.subr.bf16.mxu0 0
        %1645 = vmatpush1.bf16.xpose.msra.mxu0 0
        %1646 = vmatprep.subr.bf16.mxu0 0
        %1647 = vmatpush1.bf16.xpose.msra.mxu0 0
        %1648 = vmatprep.mubr.bf16.mxu0 0
        %1649 = vmatmul.mubr.bf16.gmra.mrb[0].mxu0 %v1611
        %v1650 = vpop.f32.mrb[0].mxu0
        %v1651 = vadd.f32 0.0, %v1650
        %v1652 = vpop.f32.mrb[0].mxu0
        %v1653 = vpop.f32.mrb[0].mxu0
        %v1654 = vpop.f32.mrb[0].mxu0
        %1655 = vdwg.mxu0
        %v1657 = vsel %vm486, %v1603, 0
        %v1660 = vsel %vm486, %v1607, 0
        %1662 = vmatprep.subr.bf16.mxu0 0
        %1663 = vmatpush1.bf16.xpose.msra.mxu0 %v1660
        %1664 = vmatprep.subr.bf16.mxu0 0
        %1665 = vmatpush1.bf16.xpose.msra.mxu0 0
        %1666 = vmatprep.subr.bf16.mxu0 0
        %1667 = vmatpush1.bf16.xpose.msra.mxu0 0
        %1668 = vmatprep.subr.bf16.mxu0 0
        %1669 = vmatpush1.bf16.xpose.msra.mxu0 0
        %1670 = vmatprep.subr.bf16.mxu0 0
        %1671 = vmatpush1.bf16.xpose.msra.mxu0 0
        %1672 = vmatprep.subr.bf16.mxu0 0
        %1673 = vmatpush1.bf16.xpose.msra.mxu0 0
        %1674 = vmatprep.subr.bf16.mxu0 0
        %1675 = vmatpush1.bf16.xpose.msra.mxu0 0
        %1676 = vmatprep.subr.bf16.mxu0 0
        %1677 = vmatpush1.bf16.xpose.msra.mxu0 0
        %1678 = vmatprep.subr.bf16.mxu0 0
        %1679 = vmatpush1.bf16.xpose.msra.mxu0 0
        %1680 = vmatprep.subr.bf16.mxu0 0
        %1681 = vmatpush1.bf16.xpose.msra.mxu0 0
        %1682 = vmatprep.subr.bf16.mxu0 0
        %1683 = vmatpush1.bf16.xpose.msra.mxu0 0
        %1684 = vmatprep.subr.bf16.mxu0 0
        %1685 = vmatpush1.bf16.xpose.msra.mxu0 0
        %1686 = vmatprep.subr.bf16.mxu0 0
        %1687 = vmatpush1.bf16.xpose.msra.mxu0 0
        %1688 = vmatprep.subr.bf16.mxu0 0
        %1689 = vmatpush1.bf16.xpose.msra.mxu0 0
        %1690 = vmatprep.subr.bf16.mxu0 0
        %1691 = vmatpush1.bf16.xpose.msra.mxu0 0
        %1692 = vmatprep.subr.bf16.mxu0 0
        %1693 = vmatpush1.bf16.xpose.msra.mxu0 0
        %1694 = vmatprep.mubr.bf16.mxu0 0
        %1695 = vmatmul.mubr.bf16.gmra.mrb[0].mxu0 %v1657
        %v1696 = vpop.f32.mrb[0].mxu0
        %v1697 = vadd.f32 0.0, %v1696
        %v1698 = vpop.f32.mrb[0].mxu0
        %v1699 = vpop.f32.mrb[0].mxu0
        %v1700 = vpop.f32.mrb[0].mxu0
        %1701 = vdwg.mxu0
        %v1703 = vsel %vm486, %v1604, 0
        %v1706 = vsel %vm486, %v1608, 0
        %1708 = vmatprep.subr.bf16.mxu0 0
        %1709 = vmatpush1.bf16.xpose.msra.mxu0 %v1706
        %1710 = vmatprep.subr.bf16.mxu0 0
        %1711 = vmatpush1.bf16.xpose.msra.mxu0 0
        %1712 = vmatprep.subr.bf16.mxu0 0
        %1713 = vmatpush1.bf16.xpose.msra.mxu0 0
        %1714 = vmatprep.subr.bf16.mxu0 0
        %1715 = vmatpush1.bf16.xpose.msra.mxu0 0
        %1716 = vmatprep.subr.bf16.mxu0 0
        %1717 = vmatpush1.bf16.xpose.msra.mxu0 0
        %1718 = vmatprep.subr.bf16.mxu0 0
        %1719 = vmatpush1.bf16.xpose.msra.mxu0 0
        %1720 = vmatprep.subr.bf16.mxu0 0
        %1721 = vmatpush1.bf16.xpose.msra.mxu0 0
        %1722 = vmatprep.subr.bf16.mxu0 0
        %1723 = vmatpush1.bf16.xpose.msra.mxu0 0
        %1724 = vmatprep.subr.bf16.mxu0 0
        %1725 = vmatpush1.bf16.xpose.msra.mxu0 0
        %1726 = vmatprep.subr.bf16.mxu0 0
        %1727 = vmatpush1.bf16.xpose.msra.mxu0 0
        %1728 = vmatprep.subr.bf16.mxu0 0
        %1729 = vmatpush1.bf16.xpose.msra.mxu0 0
        %1730 = vmatprep.subr.bf16.mxu0 0
        %1731 = vmatpush1.bf16.xpose.msra.mxu0 0
        %1732 = vmatprep.subr.bf16.mxu0 0
        %1733 = vmatpush1.bf16.xpose.msra.mxu0 0
        %1734 = vmatprep.subr.bf16.mxu0 0
        %1735 = vmatpush1.bf16.xpose.msra.mxu0 0
        %1736 = vmatprep.subr.bf16.mxu0 0
        %1737 = vmatpush1.bf16.xpose.msra.mxu0 0
        %1738 = vmatprep.subr.bf16.mxu0 0
        %1739 = vmatpush1.bf16.xpose.msra.mxu0 0
        %1740 = vmatprep.mubr.bf16.mxu0 0
        %1741 = vmatmul.mubr.bf16.gmra.mrb[0].mxu0 %v1703
        %v1742 = vpop.f32.mrb[0].mxu0
        %v1743 = vadd.f32 0.0, %v1742
        %v1744 = vpop.f32.mrb[0].mxu0
        %v1745 = vpop.f32.mrb[0].mxu0
        %v1746 = vpop.f32.mrb[0].mxu0
        %1747 = vdwg.mxu0
        %v1749 = vsel %vm486, %v1605, 0
        %v1752 = vsel %vm486, %v1609, 0
        %1754 = vmatprep.subr.bf16.mxu0 0
        %1755 = vmatpush1.bf16.xpose.msra.mxu0 %v1752
        %1756 = vmatprep.subr.bf16.mxu0 0
        %1757 = vmatpush1.bf16.xpose.msra.mxu0 0
        %1758 = vmatprep.subr.bf16.mxu0 0
        %1759 = vmatpush1.bf16.xpose.msra.mxu0 0
        %1760 = vmatprep.subr.bf16.mxu0 0
        %1761 = vmatpush1.bf16.xpose.msra.mxu0 0
        %1762 = vmatprep.subr.bf16.mxu0 0
        %1763 = vmatpush1.bf16.xpose.msra.mxu0 0
        %1764 = vmatprep.subr.bf16.mxu0 0
        %1765 = vmatpush1.bf16.xpose.msra.mxu0 0
        %1766 = vmatprep.subr.bf16.mxu0 0
        %1767 = vmatpush1.bf16.xpose.msra.mxu0 0
        %1768 = vmatprep.subr.bf16.mxu0 0
        %1769 = vmatpush1.bf16.xpose.msra.mxu0 0
        %1770 = vmatprep.subr.bf16.mxu0 0
        %1771 = vmatpush1.bf16.xpose.msra.mxu0 0
        %1772 = vmatprep.subr.bf16.mxu0 0
        %1773 = vmatpush1.bf16.xpose.msra.mxu0 0
        %1774 = vmatprep.subr.bf16.mxu0 0
        %1775 = vmatpush1.bf16.xpose.msra.mxu0 0
        %1776 = vmatprep.subr.bf16.mxu0 0
        %1777 = vmatpush1.bf16.xpose.msra.mxu0 0
        %1778 = vmatprep.subr.bf16.mxu0 0
        %1779 = vmatpush1.bf16.xpose.msra.mxu0 0
        %1780 = vmatprep.subr.bf16.mxu0 0
        %1781 = vmatpush1.bf16.xpose.msra.mxu0 0
        %1782 = vmatprep.subr.bf16.mxu0 0
        %1783 = vmatpush1.bf16.xpose.msra.mxu0 0
        %1784 = vmatprep.subr.bf16.mxu0 0
        %1785 = vmatpush1.bf16.xpose.msra.mxu0 0
        %1786 = vmatprep.mubr.bf16.mxu0 0
        %1787 = vmatmul.mubr.bf16.gmra.mrb[0].mxu0 %v1749
        %v1788 = vpop.f32.mrb[0].mxu0
        %v1789 = vadd.f32 0.0, %v1788
        %v1790 = vpop.f32.mrb[0].mxu0
        %v1791 = vpop.f32.mrb[0].mxu0
        %v1792 = vpop.f32.mrb[0].mxu0
        %1793 = vdwg.mxu0
        %v1794 = vmul.f32 %v1651, 0.17677669
        %v1795 = vmul.f32 %v1697, 0.17677669
        %v1796 = vmul.f32 %v1743, 0.17677669
        %v1797 = vmul.f32 %v1789, 0.17677669
        %v1798 = vsub.f32 1.0, %v474
        %v1799 = vsub.f32 1.0, %v475
        %v1800 = vsub.f32 1.0, %v476
        %v1801 = vsub.f32 1.0, %v477
        %v1802 = vmul.f32 %v1798, -1e+09
        %v1803 = vmul.f32 %v1799, -1e+09
        %v1804 = vmul.f32 %v1800, -1e+09
        %v1805 = vmul.f32 %v1801, -1e+09
        %v1810 = vlaneseq
        %v1811 = vshrl.u32 %v1810, 7
        %v1812 = vsub.s32 0, %v1811
        %v1813 = vrot.slane %v1802, %v1812
        %v1814 = vlaneseq
        %v1815 = vshrl.u32 %v1814, 7
        %v1816 = vsub.s32 0, %v1815
        %v1817 = vrot.slane %v1803, %v1816
        %v1818 = vlaneseq
        %v1819 = vshrl.u32 %v1818, 7
        %v1820 = vsub.s32 0, %v1819
        %v1821 = vrot.slane %v1804, %v1820
        %v1822 = vlaneseq
        %v1823 = vshrl.u32 %v1822, 7
        %v1824 = vsub.s32 0, %v1823
        %v1825 = vrot.slane %v1805, %v1824
        %v1830 = vadd.f32 %v1794, %v1813
        %v1831 = vadd.f32 %v1795, %v1817
        %v1832 = vadd.f32 %v1796, %v1821
        %v1833 = vadd.f32 %v1797, %v1825
        %vm1834 = vcmask 59392
        %v1835 = vsel %vm1834, %v1830, -inf
        %1836 = vmax.xlane.f32.xlu0 %v1835
        %v1837 = vpop.xlane.xlu0 %1836
        %v1838 = vsel %vm1834, %v1831, -inf
        %1839 = vmax.xlane.f32.xlu0 %v1838
        %v1840 = vpop.xlane.xlu0 %1839
        %v1841 = vsel %vm1834, %v1832, -inf
        %1842 = vmax.xlane.f32.xlu0 %v1841
        %v1843 = vpop.xlane.xlu0 %1842
        %v1844 = vsel %vm1834, %v1833, -inf
        %1845 = vmax.xlane.f32.xlu0 %v1844
        %v1846 = vpop.xlane.xlu0 %1845
        %v1847 = vsub.f32 %v1830, %v1837
        %v1848 = vsub.f32 %v1831, %v1840
        %v1849 = vsub.f32 %v1832, %v1843
        %v1850 = vsub.f32 %v1833, %v1846
        %v1851 = vmul.f32 %v1847, 1.442695
        %v1852 = vpow.pop %v1851
        %v1853 = vmul.f32 %v1848, 1.442695
        %v1854 = vpow.pop %v1853
        %v1855 = vmul.f32 %v1849, 1.442695
        %v1856 = vpow.pop %v1855
        %v1857 = vmul.f32 %v1850, 1.442695
        %v1858 = vpow.pop %v1857
        %v1859 = vsel %vm1834, %v1852, 0.0
        %1860 = vadd.xlane.f32.xlu0 %v1859
        %v1861 = vpop.xlane.xlu0 %1860
        %v1862 = vsel %vm1834, %v1854, 0.0
        %1863 = vadd.xlane.f32.xlu0 %v1862
        %v1864 = vpop.xlane.xlu0 %1863
        %v1865 = vsel %vm1834, %v1856, 0.0
        %1866 = vadd.xlane.f32.xlu0 %v1865
        %v1867 = vpop.xlane.xlu0 %1866
        %v1868 = vsel %vm1834, %v1858, 0.0
        %1869 = vadd.xlane.f32.xlu0 %v1868
        %v1870 = vpop.xlane.xlu0 %1869
        %v1871 = vrcp.pop %v1861
        %v1872 = vrcp.pop %v1864
        %v1873 = vrcp.pop %v1867
        %v1874 = vrcp.pop %v1870
        %v1875 = vmul.f32 %v1852, %v1871
        %v1876 = vmul.f32 %v1854, %v1872
        %v1877 = vmul.f32 %v1856, %v1873
        %v1878 = vmul.f32 %v1858, %v1874
        %v1879 = vpack.c.bf16 %v1875, %v1875
        %v1880 = vpack.c.bf16 %v1876, %v1876
        %v1881 = vpack.c.bf16 %v1877, %v1877
        %v1882 = vpack.c.bf16 %v1878, %v1878
        %v1884 = vsel %vm723, %v1879, 0
        %v1886 = vsel %vm819, %v1606, 0
        %1888 = vmatprep.subr.bf16.mxu0 0
        %1889 = vmatpush1.bf16.msra.mxu0 %v1886
        %1890 = vmatprep.subr.bf16.mxu0 0
        %1891 = vmatpush1.bf16.msra.mxu0 0
        %1892 = vmatprep.subr.bf16.mxu0 0
        %1893 = vmatpush1.bf16.msra.mxu0 0
        %1894 = vmatprep.subr.bf16.mxu0 0
        %1895 = vmatpush1.bf16.msra.mxu0 0
        %1896 = vmatprep.subr.bf16.mxu0 0
        %1897 = vmatpush1.bf16.msra.mxu0 0
        %1898 = vmatprep.subr.bf16.mxu0 0
        %1899 = vmatpush1.bf16.msra.mxu0 0
        %1900 = vmatprep.subr.bf16.mxu0 0
        %1901 = vmatpush1.bf16.msra.mxu0 0
        %1902 = vmatprep.subr.bf16.mxu0 0
        %1903 = vmatpush1.bf16.msra.mxu0 0
        %1904 = vmatprep.subr.bf16.mxu0 0
        %1905 = vmatpush1.bf16.msra.mxu0 0
        %1906 = vmatprep.subr.bf16.mxu0 0
        %1907 = vmatpush1.bf16.msra.mxu0 0
        %1908 = vmatprep.subr.bf16.mxu0 0
        %1909 = vmatpush1.bf16.msra.mxu0 0
        %1910 = vmatprep.subr.bf16.mxu0 0
        %1911 = vmatpush1.bf16.msra.mxu0 0
        %1912 = vmatprep.subr.bf16.mxu0 0
        %1913 = vmatpush1.bf16.msra.mxu0 0
        %1914 = vmatprep.subr.bf16.mxu0 0
        %1915 = vmatpush1.bf16.msra.mxu0 0
        %1916 = vmatprep.subr.bf16.mxu0 0
        %1917 = vmatpush1.bf16.msra.mxu0 0
        %1918 = vmatprep.subr.bf16.mxu0 0
        %1919 = vmatpush1.bf16.msra.mxu0 0
        %1920 = vmatprep.mubr.bf16.mxu0 0
        %1921 = vmatmul.mubr.bf16.gmra.mrb[0].mxu0 %v1884
        %v1922 = vpop.f32.mrb[0].mxu0
        %v1923 = vadd.f32 0.0, %v1922
        %v1924 = vpop.f32.mrb[0].mxu0
        %v1925 = vpop.f32.mrb[0].mxu0
        %v1926 = vpop.f32.mrb[0].mxu0
        %1927 = vdwg.mxu0
        %v1929 = vsel %vm723, %v1880, 0
        %v1931 = vsel %vm819, %v1607, 0
        %1933 = vmatprep.subr.bf16.mxu0 0
        %1934 = vmatpush1.bf16.msra.mxu0 %v1931
        %1935 = vmatprep.subr.bf16.mxu0 0
        %1936 = vmatpush1.bf16.msra.mxu0 0
        %1937 = vmatprep.subr.bf16.mxu0 0
        %1938 = vmatpush1.bf16.msra.mxu0 0
        %1939 = vmatprep.subr.bf16.mxu0 0
        %1940 = vmatpush1.bf16.msra.mxu0 0
        %1941 = vmatprep.subr.bf16.mxu0 0
        %1942 = vmatpush1.bf16.msra.mxu0 0
        %1943 = vmatprep.subr.bf16.mxu0 0
        %1944 = vmatpush1.bf16.msra.mxu0 0
        %1945 = vmatprep.subr.bf16.mxu0 0
        %1946 = vmatpush1.bf16.msra.mxu0 0
        %1947 = vmatprep.subr.bf16.mxu0 0
        %1948 = vmatpush1.bf16.msra.mxu0 0
        %1949 = vmatprep.subr.bf16.mxu0 0
        %1950 = vmatpush1.bf16.msra.mxu0 0
        %1951 = vmatprep.subr.bf16.mxu0 0
        %1952 = vmatpush1.bf16.msra.mxu0 0
        %1953 = vmatprep.subr.bf16.mxu0 0
        %1954 = vmatpush1.bf16.msra.mxu0 0
        %1955 = vmatprep.subr.bf16.mxu0 0
        %1956 = vmatpush1.bf16.msra.mxu0 0
        %1957 = vmatprep.subr.bf16.mxu0 0
        %1958 = vmatpush1.bf16.msra.mxu0 0
        %1959 = vmatprep.subr.bf16.mxu0 0
        %1960 = vmatpush1.bf16.msra.mxu0 0
        %1961 = vmatprep.subr.bf16.mxu0 0
        %1962 = vmatpush1.bf16.msra.mxu0 0
        %1963 = vmatprep.subr.bf16.mxu0 0
        %1964 = vmatpush1.bf16.msra.mxu0 0
        %1965 = vmatprep.mubr.bf16.mxu0 0
        %1966 = vmatmul.mubr.bf16.gmra.mrb[0].mxu0 %v1929
        %v1967 = vpop.f32.mrb[0].mxu0
        %v1968 = vadd.f32 0.0, %v1967
        %v1969 = vpop.f32.mrb[0].mxu0
        %v1970 = vpop.f32.mrb[0].mxu0
        %v1971 = vpop.f32.mrb[0].mxu0
        %1972 = vdwg.mxu0
        %v1974 = vsel %vm723, %v1881, 0
        %v1976 = vsel %vm819, %v1608, 0
        %1978 = vmatprep.subr.bf16.mxu0 0
        %1979 = vmatpush1.bf16.msra.mxu0 %v1976
        %1980 = vmatprep.subr.bf16.mxu0 0
        %1981 = vmatpush1.bf16.msra.mxu0 0
        %1982 = vmatprep.subr.bf16.mxu0 0
        %1983 = vmatpush1.bf16.msra.mxu0 0
        %1984 = vmatprep.subr.bf16.mxu0 0
        %1985 = vmatpush1.bf16.msra.mxu0 0
        %1986 = vmatprep.subr.bf16.mxu0 0
        %1987 = vmatpush1.bf16.msra.mxu0 0
        %1988 = vmatprep.subr.bf16.mxu0 0
        %1989 = vmatpush1.bf16.msra.mxu0 0
        %1990 = vmatprep.subr.bf16.mxu0 0
        %1991 = vmatpush1.bf16.msra.mxu0 0
        %1992 = vmatprep.subr.bf16.mxu0 0
        %1993 = vmatpush1.bf16.msra.mxu0 0
        %1994 = vmatprep.subr.bf16.mxu0 0
        %1995 = vmatpush1.bf16.msra.mxu0 0
        %1996 = vmatprep.subr.bf16.mxu0 0
        %1997 = vmatpush1.bf16.msra.mxu0 0
        %1998 = vmatprep.subr.bf16.mxu0 0
        %1999 = vmatpush1.bf16.msra.mxu0 0
        %2000 = vmatprep.subr.bf16.mxu0 0
        %2001 = vmatpush1.bf16.msra.mxu0 0
        %2002 = vmatprep.subr.bf16.mxu0 0
        %2003 = vmatpush1.bf16.msra.mxu0 0
        %2004 = vmatprep.subr.bf16.mxu0 0
        %2005 = vmatpush1.bf16.msra.mxu0 0
        %2006 = vmatprep.subr.bf16.mxu0 0
        %2007 = vmatpush1.bf16.msra.mxu0 0
        %2008 = vmatprep.subr.bf16.mxu0 0
        %2009 = vmatpush1.bf16.msra.mxu0 0
        %2010 = vmatprep.mubr.bf16.mxu0 0
        %2011 = vmatmul.mubr.bf16.gmra.mrb[0].mxu0 %v1974
        %v2012 = vpop.f32.mrb[0].mxu0
        %v2013 = vadd.f32 0.0, %v2012
        %v2014 = vpop.f32.mrb[0].mxu0
        %v2015 = vpop.f32.mrb[0].mxu0
        %v2016 = vpop.f32.mrb[0].mxu0
        %2017 = vdwg.mxu0
        %v2019 = vsel %vm723, %v1882, 0
        %v2021 = vsel %vm819, %v1609, 0
        %2023 = vmatprep.subr.bf16.mxu0 0
        %2024 = vmatpush1.bf16.msra.mxu0 %v2021
        %2025 = vmatprep.subr.bf16.mxu0 0
        %2026 = vmatpush1.bf16.msra.mxu0 0
        %2027 = vmatprep.subr.bf16.mxu0 0
        %2028 = vmatpush1.bf16.msra.mxu0 0
        %2029 = vmatprep.subr.bf16.mxu0 0
        %2030 = vmatpush1.bf16.msra.mxu0 0
        %2031 = vmatprep.subr.bf16.mxu0 0
        %2032 = vmatpush1.bf16.msra.mxu0 0
        %2033 = vmatprep.subr.bf16.mxu0 0
        %2034 = vmatpush1.bf16.msra.mxu0 0
        %2035 = vmatprep.subr.bf16.mxu0 0
        %2036 = vmatpush1.bf16.msra.mxu0 0
        %2037 = vmatprep.subr.bf16.mxu0 0
        %2038 = vmatpush1.bf16.msra.mxu0 0
        %2039 = vmatprep.subr.bf16.mxu0 0
        %2040 = vmatpush1.bf16.msra.mxu0 0
        %2041 = vmatprep.subr.bf16.mxu0 0
        %2042 = vmatpush1.bf16.msra.mxu0 0
        %2043 = vmatprep.subr.bf16.mxu0 0
        %2044 = vmatpush1.bf16.msra.mxu0 0
        %2045 = vmatprep.subr.bf16.mxu0 0
        %2046 = vmatpush1.bf16.msra.mxu0 0
        %2047 = vmatprep.subr.bf16.mxu0 0
        %2048 = vmatpush1.bf16.msra.mxu0 0
        %2049 = vmatprep.subr.bf16.mxu0 0
        %2050 = vmatpush1.bf16.msra.mxu0 0
        %2051 = vmatprep.subr.bf16.mxu0 0
        %2052 = vmatpush1.bf16.msra.mxu0 0
        %2053 = vmatprep.subr.bf16.mxu0 0
        %2054 = vmatpush1.bf16.msra.mxu0 0
        %2055 = vmatprep.mubr.bf16.mxu0 0
        %2056 = vmatmul.mubr.bf16.gmra.mrb[0].mxu0 %v2019
        %v2057 = vpop.f32.mrb[0].mxu0
        %v2058 = vadd.f32 0.0, %v2057
        %v2059 = vpop.f32.mrb[0].mxu0
        %v2060 = vpop.f32.mrb[0].mxu0
        %v2061 = vpop.f32.mrb[0].mxu0
        %2062 = vdwg.mxu0
        %2063 = vst.msk [vmem:[%s442] sm:$0x1] %vm1585, %v1571
        %2064 = vst.msk [vmem:[%s442 + $0x4] sm:$0x1] %vm1585, %v1578
        %2065 = vst.msk [vmem:[%s442 + $0x8] sm:$0x1] %vm1585, %v1579
        %2066 = vst.msk [vmem:[%s442 + $0xc] sm:$0x1] %vm1585, %v1580
        %vm2067 = vcmask 256000
        %2068 = vst.msk [vmem:[%s442 + $0x1] sm:$0x7] %vm2067, %v1923
        %2069 = vst.msk [vmem:[%s442 + $0x5] sm:$0x7] %vm2067, %v1968
        %2070 = vst.msk [vmem:[%s442 + $0x9] sm:$0x7] %vm2067, %v2013
        %2071 = vst.msk [vmem:[%s442 + $0xd] sm:$0x7] %vm2067, %v2058
        %s2072 = sand.u32 %s210, 1
        %s2073 = scalar_lea.sflag [#allocation5], %s2072
        %s2074 = sand.u32 %s210, 1
        %s2075 = smul.addr %s2074, 16
        %s2076 = scalar_lea.vmem [#allocation12], %s2075
        // Predicated region
        $region69: #{tpu_custom_call.1} parent=47 // pred_check
          %p2077 = pneg %p220
        $region70: #{tpu_custom_call.1} parent=47 // pred_check_branch
          %2079 = sbr.rel (%p2077) target = $region72
        $region71: #{tpu_custom_call.1} parent=47 // pred_region
          %s2080 = smul.u32 4, %s30
          %s2082 = ssub.s32 256, 256
          %2083 = vsyncadd %s2073, %s2082
          %s2084 = smul.addr %s2080, 64
          %s2085 = scalar_lea.hbm %s7, %s2084
          %s2086 = sshll.u32 %s2076, 4
          %s2087 = int_to_ptr.vmem [resolvable:$true] %s2086
          %2092 = dma.vmem_to_hbm [thread:$0]  %s2087, 256, %s2085, %s2073, 64, 64, 4
        $region72: #{tpu_custom_call.1} parent=47 // pred_fallthru
          _
      $region48: #{tpu_custom_call.1} parent=5 // pred_fallthru
        _
      %p2093 = scmp.le.s32.totalorder 2, %s25
      // Predicated region
      $region73: #{tpu_custom_call.1} parent=5 // pred_check
        %p2094 = pneg %p2093
      $region74: #{tpu_custom_call.1} parent=5 // pred_check_branch
        %2096 = sbr.rel (%p2094) target = $region76
      $region75: #{tpu_custom_call.1} parent=5 // pred_region
        %s2097 = ssub.s32 %s25, 2
        // Predicated region
        $region77: #{tpu_custom_call.1} parent=75 // pred_check
          %p2098 = pneg %p226
        $region78: #{tpu_custom_call.1} parent=75 // pred_check_branch
          %2100 = sbr.rel (%p2098) target = $region80
        $region79: #{tpu_custom_call.1} parent=75 // pred_region
          %s2101 = sand.u32 %s211, 1
          %s2102 = scalar_lea.sflag [#allocation5], %s2101
          %s2103 = sand.u32 %s211, 1
          %s2104 = smul.addr %s2103, 16
          %s2105 = scalar_lea.vmem [#allocation12], %s2104
          %2106 = dma.done %s2102, 256
        $region80: #{tpu_custom_call.1} parent=75 // pred_fallthru
          _
      $region76: #{tpu_custom_call.1} parent=5 // pred_fallthru
        _
    $region6: #{tpu_custom_call.1} parent=1 // loop_footer
      %s29 = sadd.s32 1, %s25
    $region7: #{tpu_custom_call.1} parent=1 // loop_footer_branch
      %24 = sbr.rel target = $region3
    $region8: #{tpu_custom_call.1} parent=1 // loop_exit
      _
    %2107 = vsyncpa [#allocation4], 1
    %s2108 = scalar_lea.sflag [#allocation4], 1
    %2109 = vsyncpa %s2108, 1
    %2110 = vsyncpa [#allocation7], 1
    %s2111 = scalar_lea.sflag [#allocation7], 1
    %2112 = vsyncpa %s2111, 1
    %2113 = vsyncpa [#allocation10], 1
    %s2114 = scalar_lea.sflag [#allocation10], 1
    %2115 = vsyncpa %s2114, 1
    %2116 = vsyncpa [#allocation5], 1
    %s2117 = scalar_lea.sflag [#allocation5], 1
    %2118 = vsyncpa %s2117, 1

</llo_original>
